<compile_context>
chip_gen: v5e
topology: v5e:2x2
jax: 0.10.0
libtpu: 0.0.40
codegen_flags: <defaults>
</compile_context>

<pallas_src>
import jax
import jax.numpy as jnp
from jax.experimental import pallas as pl
from jax.experimental.pallas import tpu as pltpu


def _round_up(v, m):
    return (v + m - 1) // m * m


def _pca_kernel(x_ref, ct_ref, mproj_ref, out_ref, acc_ref):
    """One (row-tile, feature-tile) step of  Y = X @ C^T - mean @ C^T."""
    j = pl.program_id(1)  # reduction (feature) axis, last in the grid

    @pl.when(j == 0)
    def _init():
        # Seed the accumulator with the negated precomputed mean projection
        # (a K-wide bias, K << D), broadcast over this tile's rows.
        acc_ref[...] = jnp.broadcast_to(-mproj_ref[...], acc_ref.shape)

    # Streaming MXU matmul over this feature slab, f32 accumulation.
    acc_ref[...] += jnp.dot(
        x_ref[...], ct_ref[...], preferred_element_type=jnp.float32
    )

    @pl.when(j == pl.num_programs(1) - 1)
    def _finalize():
        out_ref[...] = acc_ref[...].astype(out_ref.dtype)


def pca_transform(x, mean_, components_, *, tile_n=512, tile_d=512,
                  force_pallas=False, vmem_limit_bytes=None):
    """Pallas equivalent of PCA.transform / PCA.forward.

    Args:
      x:           [N, D] float32
      mean_:       [1, D] float32
      components_: [K, D] float32
    Returns:
      [N, K] float32
    """
    n, d = x.shape
    k, dc = components_.shape
    assert dc == d and mean_.shape == (1, d)

    if not force_pallas and n * d < 128 * 128:
        # Tiny problem: per-call / per-grid-step overhead dwarfs the work.
        return jnp.matmul(x - mean_, components_.T)

    out_dtype = x.dtype
    f32 = jnp.float32

    # Lane-dense output: pad component count up to a multiple of 128.
    k_pad = _round_up(k, 128)

    # Row tiling (sublane-aligned).
    tile_n = _round_up(min(tile_n, n), 8)
    n_pad = _round_up(n, tile_n)

    # Feature (contraction) tiling; only tile if D exceeds one slab.
    if d <= tile_d:
        tile_d_eff = d           # whole feature dim in one block
        d_pad = d
    else:
        tile_d_eff = _round_up(min(tile_d, d), 128)
        d_pad = _round_up(d, tile_d_eff)

    # Glue-level transposition / zero-padding (plain XLA, outside the kernel).
    comp_t = components_.astype(f32).T                                  # [D, K]
    comp_t_p = jnp.zeros((d_pad, k_pad), f32).at[:d, :k].set(comp_t)    # [Dp, Kp]
    x_p = x
    if n_pad != n or d_pad != d:
        x_p = jnp.zeros((n_pad, d_pad), x.dtype).at[:n, :d].set(x)
    # Precomputed centering bias: mean @ C^T, padded columns stay exactly 0.
    mproj = jnp.zeros((1, k_pad), f32).at[:, :k].set(
        jnp.matmul(mean_.astype(f32), comp_t))

    grid = (n_pad // tile_n, d_pad // tile_d_eff)

    out = pl.pallas_call(
        _pca_kernel,
        out_shape=jax.ShapeDtypeStruct((n_pad, k_pad), out_dtype),
        grid_spec=pltpu.PrefetchScalarGridSpec(
            num_scalar_prefetch=0,
            grid=grid,
            in_specs=[
                pl.BlockSpec((tile_n, tile_d_eff), lambda i, j: (i, j)),   # X tile
                pl.BlockSpec((tile_d_eff, k_pad), lambda i, j: (j, 0)),    # C^T slab
                pl.BlockSpec((1, k_pad), lambda i, j: (0, 0)),             # mean bias
            ],
            out_specs=pl.BlockSpec((tile_n, k_pad), lambda i, j: (i, 0)),
            scratch_shapes=[pltpu.VMEM((tile_n, k_pad), f32)],
        ),
        compiler_params=pltpu.CompilerParams(
            dimension_semantics=("parallel", "arbitrary"),
            vmem_limit_bytes=vmem_limit_bytes,
        ),
    )(x_p, comp_t_p, mproj)

    return out[:n, :k]


if __name__ == "__main__":
    n_components = 8
    N, D = 1000, 384  # small synthetic shapes (N not a tile multiple)

    key = jax.random.PRNGKey(0)
    kx, kfit, kc = jax.random.split(key, 3)

    # Deterministic synthetic "fitted" buffers: mean_ [1, D], components_ [K, D].
    # TODO(synk): fit() (SVD + sign flip) is not kernelized; forward == transform only.
    fit_data = jax.random.normal(kfit, (64, D), dtype=jnp.float32)
    mean_ = jnp.mean(fit_data, axis=0, keepdims=True)                      # [1, D]
    components_ = jax.random.normal(kc, (n_components, D), jnp.float32)    # [K, D]

    x = jax.random.normal(kx, (N, D), dtype=jnp.float32)

    # Pure-JAX reference of the PyTorch forward.
    y_ref = jnp.matmul(x - mean_, components_.T)

    # Default tiling: single feature slab, 2 row tiles.
    y1 = jax.block_until_ready(
        pca_transform(x, mean_, components_, force_pallas=True))
    # Smaller tiles: exercises row padding, feature padding and the
    # D-reduction accumulator path (grid = (4, 2)).
    y2 = jax.block_until_ready(
        pca_transform(x, mean_, components_, tile_n=256, tile_d=256,
                      force_pallas=True))

    assert y1.shape == (N, n_components)
    assert y2.shape == (N, n_components)
    assert jnp.allclose(y1, y_ref, atol=1e-3, rtol=1e-3)
    assert jnp.allclose(y2, y_ref, atol=1e-3, rtol=1e-3)

    print("KERNEL_OK")
</pallas_src>

<mosaic_0001>
module attributes {stable_mosaic.version = 11 : i64} {
  func.func @_pca_kernel(%arg0: i32, %arg1: i32, %arg2: memref<512x384xf32, #tpu.memory_space<vmem>>, %arg3: memref<384x128xf32, #tpu.memory_space<vmem>>, %arg4: memref<1x128xf32, #tpu.memory_space<vmem>>, %arg5: memref<512x128xf32, #tpu.memory_space<vmem>>, %arg6: memref<512x128xf32, #tpu.memory_space<vmem>>) attributes {dimension_semantics = [#tpu.dimension_semantics<parallel>, #tpu.dimension_semantics<arbitrary>], iteration_bounds = array<i64: 2, 1>, scalar_prefetch = 0 : i64, scratch_operands = 1 : i64, tpu.core_type = #tpu.core_type<tc>, window_params = [{transform_indices = @transform_0, window_bounds = array<i64: 512, 384>}, {transform_indices = @transform_1, window_bounds = array<i64: 384, 128>}, {pipeline_mode = #tpu.pipeline_mode<synchronous>, transform_indices = @transform_2, window_bounds = array<i64: 1, 128>}, {transform_indices = @transform_3, window_bounds = array<i64: 512, 128>}]} {
    %c0_i32 = arith.constant 0 : i32
    %0 = arith.cmpi eq, %arg1, %c0_i32 : i32
    %1 = arith.extui %0 : i1 to i32
    %c0_i32_0 = arith.constant 0 : i32
    %2 = arith.cmpi ne, %1, %c0_i32_0 : i32
    scf.if %2 {
      %c0_10 = arith.constant 0 : index
      %c0_11 = arith.constant 0 : index
      %12 = vector.load %arg4[%c0_10, %c0_11] : memref<1x128xf32, #tpu.memory_space<vmem>>, vector<1x128xf32>
      %cst_12 = arith.constant 0.000000e+00 : f32
      %13 = vector.broadcast %cst_12 : f32 to vector<1x128xf32>
      %14 = arith.subf %13, %12 : vector<1x128xf32>
      %15 = vector.shape_cast %14 : vector<1x128xf32> to vector<1x128xf32>
      %16 = vector.broadcast %15 : vector<1x128xf32> to vector<512x128xf32>
      %c0_13 = arith.constant 0 : index
      %c0_14 = arith.constant 0 : index
      %17 = vector.load %arg6[%c0_13, %c0_14] : memref<512x128xf32, #tpu.memory_space<vmem>>, vector<512x128xf32>
      tpu.vector_store %arg6[%c0_13, %c0_14], %16 {strides = array<i32>} : memref<512x128xf32, #tpu.memory_space<vmem>>, vector<512x128xf32>,
    } else {
    }
    %c0 = arith.constant 0 : index
    %c0_1 = arith.constant 0 : index
    %3 = vector.load %arg6[%c0, %c0_1] : memref<512x128xf32, #tpu.memory_space<vmem>>, vector<512x128xf32>
    %c0_2 = arith.constant 0 : index
    %c0_3 = arith.constant 0 : index
    %4 = vector.load %arg2[%c0_2, %c0_3] : memref<512x384xf32, #tpu.memory_space<vmem>>, vector<512x384xf32>
    %c0_4 = arith.constant 0 : index
    %c0_5 = arith.constant 0 : index
    %5 = vector.load %arg3[%c0_4, %c0_5] : memref<384x128xf32, #tpu.memory_space<vmem>>, vector<384x128xf32>
    %cst = arith.constant dense<0.000000e+00> : vector<512x128xf32>
    %6 = tpu.matmul %4, %5, %cst {dimension_numbers = #tpu.dot_dimension_numbers<[1], [0], [0], [1], [0, 0, 1, 1], [], []>} : vector<512x384xf32>, vector<384x128xf32>, vector<512x128xf32> -> vector<512x128xf32>
    %7 = arith.addf %3, %6 : vector<512x128xf32>
    %c0_6 = arith.constant 0 : index
    %c0_7 = arith.constant 0 : index
    %8 = vector.load %arg6[%c0_6, %c0_7] : memref<512x128xf32, #tpu.memory_space<vmem>>, vector<512x128xf32>
    tpu.vector_store %arg6[%c0_6, %c0_7], %7 {strides = array<i32>} : memref<512x128xf32, #tpu.memory_space<vmem>>, vector<512x128xf32>,
    %c0_i32_8 = arith.constant 0 : i32
    %9 = arith.cmpi eq, %arg1, %c0_i32_8 : i32
    %10 = arith.extui %9 : i1 to i32
    %c0_i32_9 = arith.constant 0 : i32
    %11 = arith.cmpi ne, %10, %c0_i32_9 : i32
    scf.if %11 {
      %c0_10 = arith.constant 0 : index
      %c0_11 = arith.constant 0 : index
      %12 = vector.load %arg6[%c0_10, %c0_11] : memref<512x128xf32, #tpu.memory_space<vmem>>, vector<512x128xf32>
      %c0_12 = arith.constant 0 : index
      %c0_13 = arith.constant 0 : index
      %13 = vector.load %arg5[%c0_12, %c0_13] : memref<512x128xf32, #tpu.memory_space<vmem>>, vector<512x128xf32>
      tpu.vector_store %arg5[%c0_12, %c0_13], %12 {strides = array<i32>} : memref<512x128xf32, #tpu.memory_space<vmem>>, vector<512x128xf32>,
    } else {
    }
    return
  }
  func.func @transform_0(%arg0: i32, %arg1: i32) -> (i32, i32) {
    %c0_i32 = arith.constant 0 : i32
    return %arg0, %arg1 : i32, i32
  }
  func.func @transform_1(%arg0: i32, %arg1: i32) -> (i32, i32) {
    %c0_i32 = arith.constant 0 : i32
    %c0_i32_0 = arith.constant 0 : i32
    return %arg1, %c0_i32 : i32, i32
  }
  func.func @transform_2(%arg0: i32, %arg1: i32) -> (i32, i32) {
    %c0_i32 = arith.constant 0 : i32
    %c0_i32_0 = arith.constant 0 : i32
    %c0_i32_1 = arith.constant 0 : i32
    return %c0_i32, %c0_i32_0 : i32, i32
  }
  func.func @transform_3(%arg0: i32, %arg1: i32) -> (i32, i32) {
    %c0_i32 = arith.constant 0 : i32
    %c0_i32_0 = arith.constant 0 : i32
    return %arg0, %c0_i32 : i32, i32
  }
}

</mosaic_0001>

<llo_original>
// kernel: tpu_custom_call.1
$region0: #{tpu_custom_call.1}
  #allocation0 [shape = 'u32[]', space=smem, size = 0x4, offset = 0x4, fixed_abs, tag = 'smem constant byte address 0x4 - core index']
  #allocation1 [shape = 'u32[72,128]{1,0:T(1,128)}', space=vmem, size = 0x9000, scoped, tag = 'internal scratch']
  #allocation2 [shape = 'f32[512,128]{1,0:T(8,128)}', space=vmem, size = 0x40000, scoped, tag = 'scratch operand']
  %s0 = inlined_call_operand.hbm [shape: f32[1024,384], index: 0, kind: input, shape index: {}]
  %s1 = inlined_call_operand.hbm [shape: f32[384,128], index: 1, kind: input, shape index: {}]
  %s2 = inlined_call_operand.hbm [shape: f32[1,128], index: 2, kind: input, shape index: {}]
  %s3 = inlined_call_operand.hbm [shape: f32[1024,128], index: 3, kind: output, shape index: {}]
  %s4 = sld [smem:[#allocation0]]
  $region65: #{tpu_custom_call.1} parent=0
    _
  %s6 = ssub.s32 1, %s4
  %s7 = scalar_select 0, %s6, %s4
  $region1: #{tpu_custom_call.1} parent=0
    #allocation3 [shape = 'u8[1572864]{0}', space=vmem, size = 0x180000, scoped, tag = 'input window, operand 0']
    #allocation4 [shape = 's32[2]{0}', space=sflag, size = 0x8, scoped, tag = 'scoped memory for tpu_custom_call.1']
    #allocation5 [shape = 's32[2]{0}', space=sflag, size = 0x8, scoped, tag = 'scoped memory for tpu_custom_call.1']
    #allocation6 [shape = 'u8[196608]{0}', space=vmem, size = 0x30000, scoped, tag = 'input window, operand 1, single buffered']
    #allocation7 [shape = 's32[1]{0}', space=sflag, size = 0x4, scoped, tag = 'scoped memory for tpu_custom_call.1']
    #allocation8 [shape = 'u8[512]{0}', space=vmem, size = 0x400, scoped, tag = 'input window, operand 2, single buffered']
    #allocation9 [shape = 'u8[524288]{0}', space=vmem, size = 0x80000, scoped, tag = 'output window, operand 0']
    %8 = vsyncpa [#allocation4], 0
    %s9 = scalar_lea.sflag [#allocation4], 1
    %10 = vsyncpa %s9, 0
    %11 = vsyncpa [#allocation7], 0
    %12 = vsyncpa [#allocation5], 0
    %s13 = scalar_lea.sflag [#allocation5], 1
    %14 = vsyncpa %s13, 0
    loop: start=0, step=1, limit=4
    $region2: #{tpu_custom_call.1} parent=1 // loop_pre_header
      _
    $region3: #{tpu_custom_call.1} parent=1 // loop_header
      %s16 = sphi 0, %s20
      %p17 = scmp.ge.s32.totalorder %s16, 4
      %s23 = sphi 0, %s35
      %s24 = sphi 0, %s31
      %s25 = sphi 0, %s23
      %s26 = sphi 0, %s24
      %s27 = sphi 0, %s25
      %s28 = sphi 0, %s26
      %s40 = sphi 0, %s42
      %s43 = sphi 0, %s40
      %s44 = sphi 0, %s43
      %s60 = sphi 0, %s44
      %s66 = sphi 0, %s68
      %s69 = sphi 0, %s66
      %s70 = sphi 0, %s69
      %s86 = sphi 0, %s70
      %s90 = sphi 0, %s90
      %s92 = sphi 0, %s90
      %s93 = sphi 0, %s92
      %s107 = sphi 0, %s93
      %s113 = sphi 0, %s115
      %s116 = sphi 0, %s113
      %s117 = sphi 0, %s116
      %s133 = sphi 0, %s117
    $region4: #{tpu_custom_call.1} parent=1 // loop_header_branch
      %19 = sbr.rel (%p17) target = $region8
    $region5: #{tpu_custom_call.1} parent=1 // loop_body
      %s21 = ssub.s32 %s16, 1
      %s22 = ssub.s32 %s16, 2
      %s29 = sadd.s32 1, %s24
      %p30 = scmp.ge.s32.totalorder %s29, 1
      %s31 = scalar_select %p30, 0, %s29
      %s32 = sadd.s32 1, %s23
      %s33 = scalar_select %p30, %s32, %s23
      %p34 = scmp.ge.s32.totalorder %s33, 2
      %s35 = scalar_select %p34, 0, %s33
      %s36 = ssub.s32 %s23, %s35
      %s37 = ssub.s32 %s24, %s31
      %s38 = sor.u32 %s36, %s37
      %p39 = scmp.eq.s32.totalorder %s38, 0
      %s41 = sadd.s32 %s40, 1
      %s42 = scalar_select %p39, %s40, %s41
      %p45 = pneg %p39
      %p46 = scmp.eq.s32.totalorder %s16, 1
      %p47 = por %p45, %p46
      %p48 = scmp.ne.s32.totalorder %s40, %s43
      %p49 = scmp.eq.s32.totalorder %s16, 0
      %p50 = por %p48, %p49
      %p51 = scmp.ne.s32.totalorder %s40, %s43
      %p52 = scmp.eq.s32.totalorder %s21, 1
      %p53 = por %p51, %p52
      %p54 = scmp.ne.s32.totalorder %s43, %s44
      %p55 = scmp.eq.s32.totalorder %s21, 0
      %p56 = por %p54, %p55
      %p57 = scmp.ne.s32.totalorder %s43, %s44
      %p58 = scmp.eq.s32.totalorder %s22, 1
      %p59 = por %p57, %p58
      %p61 = scmp.ne.s32.totalorder %s44, %s60
      %p62 = scmp.eq.s32.totalorder %s22, 0
      %p63 = por %p61, %p62
      %s64 = ssub.s32 %s24, %s31
      %p65 = scmp.eq.s32.totalorder %s64, 0
      %s67 = sadd.s32 %s66, 1
      %s68 = scalar_select %p65, %s66, %s67
      %p71 = pneg %p65
      %p72 = scmp.eq.s32.totalorder %s16, 1
      %p73 = por %p71, %p72
      %p74 = scmp.ne.s32.totalorder %s66, %s69
      %p75 = scmp.eq.s32.totalorder %s16, 0
      %p76 = por %p74, %p75
      %p77 = scmp.ne.s32.totalorder %s66, %s69
      %p78 = scmp.eq.s32.totalorder %s21, 1
      %p79 = por %p77, %p78
      %p80 = scmp.ne.s32.totalorder %s69, %s70
      %p81 = scmp.eq.s32.totalorder %s21, 0
      %p82 = por %p80, %p81
      %p83 = scmp.ne.s32.totalorder %s69, %s70
      %p84 = scmp.eq.s32.totalorder %s22, 1
      %p85 = por %p83, %p84
      %p87 = scmp.ne.s32.totalorder %s70, %s86
      %p88 = scmp.eq.s32.totalorder %s22, 0
      %p89 = por %p87, %p88
      %s91 = sadd.s32 %s90, 1
      %p94 = scmp.eq.s32.totalorder %s16, 1
      %p95 = scmp.ne.s32.totalorder %s90, %s92
      %p96 = scmp.eq.s32.totalorder %s16, 0
      %p97 = por %p95, %p96
      %p98 = scmp.ne.s32.totalorder %s90, %s92
      %p99 = scmp.eq.s32.totalorder %s21, 1
      %p100 = por %p98, %p99
      %p101 = scmp.ne.s32.totalorder %s92, %s93
      %p102 = scmp.eq.s32.totalorder %s21, 0
      %p103 = por %p101, %p102
      %p104 = scmp.ne.s32.totalorder %s92, %s93
      %p105 = scmp.eq.s32.totalorder %s22, 1
      %p106 = por %p104, %p105
      %p108 = scmp.ne.s32.totalorder %s93, %s107
      %p109 = scmp.eq.s32.totalorder %s22, 0
      %p110 = por %p108, %p109
      %s111 = ssub.s32 %s23, %s35
      %p112 = scmp.eq.s32.totalorder %s111, 0
      %s114 = sadd.s32 %s113, 1
      %s115 = scalar_select %p112, %s113, %s114
      %p118 = pneg %p112
      %p119 = scmp.eq.s32.totalorder %s16, 1
      %p120 = por %p118, %p119
      %p121 = scmp.ne.s32.totalorder %s113, %s116
      %p122 = scmp.eq.s32.totalorder %s16, 0
      %p123 = por %p121, %p122
      %p124 = scmp.ne.s32.totalorder %s113, %s116
      %p125 = scmp.eq.s32.totalorder %s21, 1
      %p126 = por %p124, %p125
      %p127 = scmp.ne.s32.totalorder %s116, %s117
      %p128 = scmp.eq.s32.totalorder %s21, 0
      %p129 = por %p127, %p128
      %p130 = scmp.ne.s32.totalorder %s116, %s117
      %p131 = scmp.eq.s32.totalorder %s22, 1
      %p132 = por %p130, %p131
      %p134 = scmp.ne.s32.totalorder %s117, %s133
      %p135 = scmp.eq.s32.totalorder %s22, 0
      %p136 = por %p134, %p135
      %p137 = scmp.le.s32.totalorder 1, %s16
      %p138 = scmp.lt.s32.totalorder %s16, 3
      %p139 = pnand %p137, %p138
      %p140 = pneg %p139
      // Predicated region
      $region9: #{tpu_custom_call.1} parent=5 // pred_check
        _
      $region10: #{tpu_custom_call.1} parent=5 // pred_check_branch
        %142 = sbr.rel (%p139) target = $region12
      $region11: #{tpu_custom_call.1} parent=5 // pred_region
        %s143 = ssub.s32 %s16, 1
        // Predicated region
        $region13: #{tpu_custom_call.1} parent=11 // pred_check
          %p144 = pneg %p82
        $region14: #{tpu_custom_call.1} parent=11 // pred_check_branch
          %146 = sbr.rel (%p144) target = $region16
        $region15: #{tpu_custom_call.1} parent=11 // pred_region
          %s147 = smul.u32 48, %s26
          %149 = vsyncadd [#allocation7], 0
          %s150 = smul.addr %s147, 8
          %s151 = scalar_lea.hbm %s1, %s150
          %s152 = sshll.u32 %s151, 4
          %s153 = int_to_ptr.hbm [resolvable:$true] %s152
          %s154 = sshll.u32 [#allocation6], 4
          %s155 = int_to_ptr.vmem [resolvable:$true] %s154
          %160 = dma.hbm_to_vmem [thread:$0]  %s153, 6144, %s155, [#allocation7], 128, 128, 8
        $region16: #{tpu_custom_call.1} parent=11 // pred_fallthru
          _
        // Predicated region
        $region17: #{tpu_custom_call.1} parent=11 // pred_check
          %p161 = pneg %p103
        $region18: #{tpu_custom_call.1} parent=11 // pred_check_branch
          %163 = sbr.rel (%p161) target = $region20
        $region19: #{tpu_custom_call.1} parent=11 // pred_region
          %165 = vsyncadd [#allocation7], 0
          %s167 = sshll.u32 %s2, 4
          %s168 = int_to_ptr.hbm [resolvable:$true] %s167
          %s169 = sshll.u32 [#allocation8], 4
          %s170 = int_to_ptr.vmem [resolvable:$true] %s169
          %172 = dma.hbm_to_vmem [thread:$0]  %s168, 16, %s170, [#allocation7]
        $region20: #{tpu_custom_call.1} parent=11 // pred_fallthru
          _
      $region12: #{tpu_custom_call.1} parent=5 // pred_fallthru
        _
      %p173 = scmp.lt.s32.totalorder %s16, 2
      // Predicated region
      $region21: #{tpu_custom_call.1} parent=5 // pred_check
        %p174 = pneg %p173
      $region22: #{tpu_custom_call.1} parent=5 // pred_check_branch
        %176 = sbr.rel (%p174) target = $region24
      $region23: #{tpu_custom_call.1} parent=5 // pred_region
        // Predicated region
        $region25: #{tpu_custom_call.1} parent=23 // pred_check
          %p177 = pneg %p50
        $region26: #{tpu_custom_call.1} parent=23 // pred_check_branch
          %179 = sbr.rel (%p177) target = $region28
        $region27: #{tpu_custom_call.1} parent=23 // pred_region
          %s180 = sand.u32 %s40, 1
          %s181 = scalar_lea.sflag [#allocation4], %s180
          %s182 = sand.u32 %s40, 1
          %s183 = smul.addr %s182, 1536
          %s184 = scalar_lea.vmem [#allocation3], %s183
          %s185 = smul.u32 64, %s23
          %s186 = smul.u32 3, %s24
          %188 = vsyncadd %s181, 0
          %s189 = smul.addr %s185, 3
          %s190 = sadd.s32 %s186, %s189
          %s191 = smul.addr %s190, 8
          %s192 = scalar_lea.hbm %s0, %s191
          %s193 = sshll.u32 %s192, 4
          %s194 = int_to_ptr.hbm [resolvable:$true] %s193
          %s195 = sshll.u32 %s184, 4
          %s196 = int_to_ptr.vmem [resolvable:$true] %s195
          %201 = dma.hbm_to_vmem [thread:$0]  %s194, 24576, %s196, %s181, 384, 384, 24
        $region28: #{tpu_custom_call.1} parent=23 // pred_fallthru
          _
      $region24: #{tpu_custom_call.1} parent=5 // pred_fallthru
        _
      %p202 = scmp.le.s32.totalorder 1, %s16
      %p203 = scmp.lt.s32.totalorder %s16, 3
      %p204 = pnand %p202, %p203
      %p205 = pneg %p204
      // Predicated region
      $region29: #{tpu_custom_call.1} parent=5 // pred_check
        _
      $region30: #{tpu_custom_call.1} parent=5 // pred_check_branch
        %207 = sbr.rel (%p204) target = $region32
      $region31: #{tpu_custom_call.1} parent=5 // pred_region
        %s208 = ssub.s32 %s16, 1
        %s209 = sand.u32 %s43, 1
        %s210 = scalar_lea.sflag [#allocation4], %s209
        %s211 = sand.u32 %s43, 1
        %s212 = smul.addr %s211, 1536
        %s213 = scalar_lea.vmem [#allocation3], %s212
        // Predicated region
        $region33: #{tpu_custom_call.1} parent=31 // pred_check
          %p214 = pneg %p56
        $region34: #{tpu_custom_call.1} parent=31 // pred_check_branch
          %216 = sbr.rel (%p214) target = $region36
        $region35: #{tpu_custom_call.1} parent=31 // pred_region
          %218 = dma.done %s210, 24576
        $region36: #{tpu_custom_call.1} parent=31 // pred_fallthru
          _
        // Predicated region
        $region37: #{tpu_custom_call.1} parent=31 // pred_check
          %p219 = pneg %p82
        $region38: #{tpu_custom_call.1} parent=31 // pred_check_branch
          %221 = sbr.rel (%p219) target = $region40
        $region39: #{tpu_custom_call.1} parent=31 // pred_region
          %223 = dma.done [#allocation7], 6144
        $region40: #{tpu_custom_call.1} parent=31 // pred_fallthru
          _
        // Predicated region
        $region41: #{tpu_custom_call.1} parent=31 // pred_check
          %p224 = pneg %p103
        $region42: #{tpu_custom_call.1} parent=31 // pred_check_branch
          %226 = sbr.rel (%p224) target = $region44
        $region43: #{tpu_custom_call.1} parent=31 // pred_region
          %228 = dma.done [#allocation7], 16
        $region44: #{tpu_custom_call.1} parent=31 // pred_fallthru
          _
        %s229 = sand.u32 %s43, 1
        %s230 = scalar_lea.sflag [#allocation4], %s229
        %s231 = sand.u32 %s43, 1
        %s232 = smul.addr %s231, 1536
        %s233 = scalar_lea.vmem [#allocation3], %s232
        %p234 = pneg %p56
        %p235 = pneg %p53
        %p236 = pneg %p82
        %p237 = pneg %p79
        %p238 = pneg %p103
        %p239 = pneg %p100
        %p240 = pneg %p129
        %p241 = pneg %p126
        %s242 = sand.u32 %s116, 1
        %s243 = scalar_lea.sflag [#allocation5], %s242
        %s244 = sand.u32 %s116, 1
        %s245 = smul.addr %s244, 512
        %s246 = scalar_lea.vmem [#allocation9], %s245
        %s247 = smul.u32 64, %s25
        %s248 = smul.u32 3, %s26
        %s249 = smul.u32 48, %s26
        %s250 = smul.u32 64, %s25
        %p251 = scmp.eq.s32.totalorder %s26, 0
        // Predicated region
        $region45: #{tpu_custom_call.1} parent=31 // pred_check
          %p252 = pneg %p251
        $region46: #{tpu_custom_call.1} parent=31 // pred_check_branch
          %254 = sbr.rel (%p252) target = $region48
        $region47: #{tpu_custom_call.1} parent=31 // pred_region
          %v255 = vld [vmem:[#allocation8] sm:$0x1]
          %v256 = vsub.f32 0.0, %v255
          %v258 = vperm.slane %v256, 0
          %260 = vst [vmem:[#allocation2] sm:$0xff] %v258
          %261 = vst [vmem:[#allocation2 + $0x8] sm:$0xff] %v258
          %262 = vst [vmem:[#allocation2 + $0x10] sm:$0xff] %v258
          %263 = vst [vmem:[#allocation2 + $0x18] sm:$0xff] %v258
          %264 = vst [vmem:[#allocation2 + $0x20] sm:$0xff] %v258
          %265 = vst [vmem:[#allocation2 + $0x28] sm:$0xff] %v258
          %266 = vst [vmem:[#allocation2 + $0x30] sm:$0xff] %v258
          %267 = vst [vmem:[#allocation2 + $0x38] sm:$0xff] %v258
          %268 = vst [vmem:[#allocation2 + $0x40] sm:$0xff] %v258
          %269 = vst [vmem:[#allocation2 + $0x48] sm:$0xff] %v258
          %270 = vst [vmem:[#allocation2 + $0x50] sm:$0xff] %v258
          %271 = vst [vmem:[#allocation2 + $0x58] sm:$0xff] %v258
          %272 = vst [vmem:[#allocation2 + $0x60] sm:$0xff] %v258
          %273 = vst [vmem:[#allocation2 + $0x68] sm:$0xff] %v258
          %274 = vst [vmem:[#allocation2 + $0x70] sm:$0xff] %v258
          %275 = vst [vmem:[#allocation2 + $0x78] sm:$0xff] %v258
          %276 = vst [vmem:[#allocation2 + $0x80] sm:$0xff] %v258
          %277 = vst [vmem:[#allocation2 + $0x88] sm:$0xff] %v258
          %278 = vst [vmem:[#allocation2 + $0x90] sm:$0xff] %v258
          %279 = vst [vmem:[#allocation2 + $0x98] sm:$0xff] %v258
          %280 = vst [vmem:[#allocation2 + $0xa0] sm:$0xff] %v258
          %281 = vst [vmem:[#allocation2 + $0xa8] sm:$0xff] %v258
          %282 = vst [vmem:[#allocation2 + $0xb0] sm:$0xff] %v258
          %283 = vst [vmem:[#allocation2 + $0xb8] sm:$0xff] %v258
          %284 = vst [vmem:[#allocation2 + $0xc0] sm:$0xff] %v258
          %285 = vst [vmem:[#allocation2 + $0xc8] sm:$0xff] %v258
          %286 = vst [vmem:[#allocation2 + $0xd0] sm:$0xff] %v258
          %287 = vst [vmem:[#allocation2 + $0xd8] sm:$0xff] %v258
          %288 = vst [vmem:[#allocation2 + $0xe0] sm:$0xff] %v258
          %289 = vst [vmem:[#allocation2 + $0xe8] sm:$0xff] %v258
          %290 = vst [vmem:[#allocation2 + $0xf0] sm:$0xff] %v258
          %291 = vst [vmem:[#allocation2 + $0xf8] sm:$0xff] %v258
          %292 = vst [vmem:[#allocation2 + $0x100] sm:$0xff] %v258
          %293 = vst [vmem:[#allocation2 + $0x108] sm:$0xff] %v258
          %294 = vst [vmem:[#allocation2 + $0x110] sm:$0xff] %v258
          %295 = vst [vmem:[#allocation2 + $0x118] sm:$0xff] %v258
          %296 = vst [vmem:[#allocation2 + $0x120] sm:$0xff] %v258
          %297 = vst [vmem:[#allocation2 + $0x128] sm:$0xff] %v258
          %298 = vst [vmem:[#allocation2 + $0x130] sm:$0xff] %v258
          %299 = vst [vmem:[#allocation2 + $0x138] sm:$0xff] %v258
          %300 = vst [vmem:[#allocation2 + $0x140] sm:$0xff] %v258
          %301 = vst [vmem:[#allocation2 + $0x148] sm:$0xff] %v258
          %302 = vst [vmem:[#allocation2 + $0x150] sm:$0xff] %v258
          %303 = vst [vmem:[#allocation2 + $0x158] sm:$0xff] %v258
          %304 = vst [vmem:[#allocation2 + $0x160] sm:$0xff] %v258
          %305 = vst [vmem:[#allocation2 + $0x168] sm:$0xff] %v258
          %306 = vst [vmem:[#allocation2 + $0x170] sm:$0xff] %v258
          %307 = vst [vmem:[#allocation2 + $0x178] sm:$0xff] %v258
          %308 = vst [vmem:[#allocation2 + $0x180] sm:$0xff] %v258
          %309 = vst [vmem:[#allocation2 + $0x188] sm:$0xff] %v258
          %310 = vst [vmem:[#allocation2 + $0x190] sm:$0xff] %v258
          %311 = vst [vmem:[#allocation2 + $0x198] sm:$0xff] %v258
          %312 = vst [vmem:[#allocation2 + $0x1a0] sm:$0xff] %v258
          %313 = vst [vmem:[#allocation2 + $0x1a8] sm:$0xff] %v258
          %314 = vst [vmem:[#allocation2 + $0x1b0] sm:$0xff] %v258
          %315 = vst [vmem:[#allocation2 + $0x1b8] sm:$0xff] %v258
          %316 = vst [vmem:[#allocation2 + $0x1c0] sm:$0xff] %v258
          %317 = vst [vmem:[#allocation2 + $0x1c8] sm:$0xff] %v258
          %318 = vst [vmem:[#allocation2 + $0x1d0] sm:$0xff] %v258
          %319 = vst [vmem:[#allocation2 + $0x1d8] sm:$0xff] %v258
          %320 = vst [vmem:[#allocation2 + $0x1e0] sm:$0xff] %v258
          %321 = vst [vmem:[#allocation2 + $0x1e8] sm:$0xff] %v258
          %322 = vst [vmem:[#allocation2 + $0x1f0] sm:$0xff] %v258
          %323 = vst [vmem:[#allocation2 + $0x1f8] sm:$0xff] %v258
        $region48: #{tpu_custom_call.1} parent=31 // pred_fallthru
          _
        %v324 = vld [vmem:[#allocation2] sm:$0xff]
        %v325 = vld [vmem:[#allocation2 + $0x8] sm:$0xff]
        %v326 = vld [vmem:[#allocation2 + $0x10] sm:$0xff]
        %v327 = vld [vmem:[#allocation2 + $0x18] sm:$0xff]
        %v328 = vld [vmem:[#allocation2 + $0x20] sm:$0xff]
        %v329 = vld [vmem:[#allocation2 + $0x28] sm:$0xff]
        %v330 = vld [vmem:[#allocation2 + $0x30] sm:$0xff]
        %v331 = vld [vmem:[#allocation2 + $0x38] sm:$0xff]
        %v332 = vld [vmem:[#allocation2 + $0x40] sm:$0xff]
        %v333 = vld [vmem:[#allocation2 + $0x48] sm:$0xff]
        %v334 = vld [vmem:[#allocation2 + $0x50] sm:$0xff]
        %v335 = vld [vmem:[#allocation2 + $0x58] sm:$0xff]
        %v336 = vld [vmem:[#allocation2 + $0x60] sm:$0xff]
        %v337 = vld [vmem:[#allocation2 + $0x68] sm:$0xff]
        %v338 = vld [vmem:[#allocation2 + $0x70] sm:$0xff]
        %v339 = vld [vmem:[#allocation2 + $0x78] sm:$0xff]
        %v340 = vld [vmem:[#allocation2 + $0x80] sm:$0xff]
        %v341 = vld [vmem:[#allocation2 + $0x88] sm:$0xff]
        %v342 = vld [vmem:[#allocation2 + $0x90] sm:$0xff]
        %v343 = vld [vmem:[#allocation2 + $0x98] sm:$0xff]
        %v344 = vld [vmem:[#allocation2 + $0xa0] sm:$0xff]
        %v345 = vld [vmem:[#allocation2 + $0xa8] sm:$0xff]
        %v346 = vld [vmem:[#allocation2 + $0xb0] sm:$0xff]
        %v347 = vld [vmem:[#allocation2 + $0xb8] sm:$0xff]
        %v348 = vld [vmem:[#allocation2 + $0xc0] sm:$0xff]
        %v349 = vld [vmem:[#allocation2 + $0xc8] sm:$0xff]
        %v350 = vld [vmem:[#allocation2 + $0xd0] sm:$0xff]
        %v351 = vld [vmem:[#allocation2 + $0xd8] sm:$0xff]
        %v352 = vld [vmem:[#allocation2 + $0xe0] sm:$0xff]
        %v353 = vld [vmem:[#allocation2 + $0xe8] sm:$0xff]
        %v354 = vld [vmem:[#allocation2 + $0xf0] sm:$0xff]
        %v355 = vld [vmem:[#allocation2 + $0xf8] sm:$0xff]
        %v356 = vld [vmem:[#allocation2 + $0x100] sm:$0xff]
        %v357 = vld [vmem:[#allocation2 + $0x108] sm:$0xff]
        %v358 = vld [vmem:[#allocation2 + $0x110] sm:$0xff]
        %v359 = vld [vmem:[#allocation2 + $0x118] sm:$0xff]
        %v360 = vld [vmem:[#allocation2 + $0x120] sm:$0xff]
        %v361 = vld [vmem:[#allocation2 + $0x128] sm:$0xff]
        %v362 = vld [vmem:[#allocation2 + $0x130] sm:$0xff]
        %v363 = vld [vmem:[#allocation2 + $0x138] sm:$0xff]
        %v364 = vld [vmem:[#allocation2 + $0x140] sm:$0xff]
        %v365 = vld [vmem:[#allocation2 + $0x148] sm:$0xff]
        %v366 = vld [vmem:[#allocation2 + $0x150] sm:$0xff]
        %v367 = vld [vmem:[#allocation2 + $0x158] sm:$0xff]
        %v368 = vld [vmem:[#allocation2 + $0x160] sm:$0xff]
        %v369 = vld [vmem:[#allocation2 + $0x168] sm:$0xff]
        %v370 = vld [vmem:[#allocation2 + $0x170] sm:$0xff]
        %v371 = vld [vmem:[#allocation2 + $0x178] sm:$0xff]
        %v372 = vld [vmem:[#allocation2 + $0x180] sm:$0xff]
        %v373 = vld [vmem:[#allocation2 + $0x188] sm:$0xff]
        %v374 = vld [vmem:[#allocation2 + $0x190] sm:$0xff]
        %v375 = vld [vmem:[#allocation2 + $0x198] sm:$0xff]
        %v376 = vld [vmem:[#allocation2 + $0x1a0] sm:$0xff]
        %v377 = vld [vmem:[#allocation2 + $0x1a8] sm:$0xff]
        %v378 = vld [vmem:[#allocation2 + $0x1b0] sm:$0xff]
        %v379 = vld [vmem:[#allocation2 + $0x1b8] sm:$0xff]
        %v380 = vld [vmem:[#allocation2 + $0x1c0] sm:$0xff]
        %v381 = vld [vmem:[#allocation2 + $0x1c8] sm:$0xff]
        %v382 = vld [vmem:[#allocation2 + $0x1d0] sm:$0xff]
        %v383 = vld [vmem:[#allocation2 + $0x1d8] sm:$0xff]
        %v384 = vld [vmem:[#allocation2 + $0x1e0] sm:$0xff]
        %v385 = vld [vmem:[#allocation2 + $0x1e8] sm:$0xff]
        %v386 = vld [vmem:[#allocation2 + $0x1f0] sm:$0xff]
        %v387 = vld [vmem:[#allocation2 + $0x1f8] sm:$0xff]
        %v388 = vld [vmem:[%s213] sm:$0xff]
        %v389 = vld [vmem:[%s213 + $0x8] sm:$0xff]
        %v390 = vld [vmem:[%s213 + $0x10] sm:$0xff]
        %v391 = vld [vmem:[%s213 + $0x18] sm:$0xff]
        %v392 = vld [vmem:[%s213 + $0x20] sm:$0xff]
        %v393 = vld [vmem:[%s213 + $0x28] sm:$0xff]
        %v394 = vld [vmem:[%s213 + $0x30] sm:$0xff]
        %v395 = vld [vmem:[%s213 + $0x38] sm:$0xff]
        %v396 = vld [vmem:[%s213 + $0x40] sm:$0xff]
        %v397 = vld [vmem:[%s213 + $0x48] sm:$0xff]
        %v398 = vld [vmem:[%s213 + $0x50] sm:$0xff]
        %v399 = vld [vmem:[%s213 + $0x58] sm:$0xff]
        %v400 = vld [vmem:[%s213 + $0x60] sm:$0xff]
        %v401 = vld [vmem:[%s213 + $0x68] sm:$0xff]
        %v402 = vld [vmem:[%s213 + $0x70] sm:$0xff]
        %v403 = vld [vmem:[%s213 + $0x78] sm:$0xff]
        %v404 = vld [vmem:[%s213 + $0x80] sm:$0xff]
        %v405 = vld [vmem:[%s213 + $0x88] sm:$0xff]
        %v406 = vld [vmem:[%s213 + $0x90] sm:$0xff]
        %v407 = vld [vmem:[%s213 + $0x98] sm:$0xff]
        %v408 = vld [vmem:[%s213 + $0xa0] sm:$0xff]
        %v409 = vld [vmem:[%s213 + $0xa8] sm:$0xff]
        %v410 = vld [vmem:[%s213 + $0xb0] sm:$0xff]
        %v411 = vld [vmem:[%s213 + $0xb8] sm:$0xff]
        %v412 = vld [vmem:[%s213 + $0xc0] sm:$0xff]
        %v413 = vld [vmem:[%s213 + $0xc8] sm:$0xff]
        %v414 = vld [vmem:[%s213 + $0xd0] sm:$0xff]
        %v415 = vld [vmem:[%s213 + $0xd8] sm:$0xff]
        %v416 = vld [vmem:[%s213 + $0xe0] sm:$0xff]
        %v417 = vld [vmem:[%s213 + $0xe8] sm:$0xff]
        %v418 = vld [vmem:[%s213 + $0xf0] sm:$0xff]
        %v419 = vld [vmem:[%s213 + $0xf8] sm:$0xff]
        %v420 = vld [vmem:[%s213 + $0x100] sm:$0xff]
        %v421 = vld [vmem:[%s213 + $0x108] sm:$0xff]
        %v422 = vld [vmem:[%s213 + $0x110] sm:$0xff]
        %v423 = vld [vmem:[%s213 + $0x118] sm:$0xff]
        %v424 = vld [vmem:[%s213 + $0x120] sm:$0xff]
        %v425 = vld [vmem:[%s213 + $0x128] sm:$0xff]
        %v426 = vld [vmem:[%s213 + $0x130] sm:$0xff]
        %v427 = vld [vmem:[%s213 + $0x138] sm:$0xff]
        %v428 = vld [vmem:[%s213 + $0x140] sm:$0xff]
        %v429 = vld [vmem:[%s213 + $0x148] sm:$0xff]
        %v430 = vld [vmem:[%s213 + $0x150] sm:$0xff]
        %v431 = vld [vmem:[%s213 + $0x158] sm:$0xff]
        %v432 = vld [vmem:[%s213 + $0x160] sm:$0xff]
        %v433 = vld [vmem:[%s213 + $0x168] sm:$0xff]
        %v434 = vld [vmem:[%s213 + $0x170] sm:$0xff]
        %v435 = vld [vmem:[%s213 + $0x178] sm:$0xff]
        %v436 = vld [vmem:[%s213 + $0x180] sm:$0xff]
        %v437 = vld [vmem:[%s213 + $0x188] sm:$0xff]
        %v438 = vld [vmem:[%s213 + $0x190] sm:$0xff]
        %v439 = vld [vmem:[%s213 + $0x198] sm:$0xff]
        %v440 = vld [vmem:[%s213 + $0x1a0] sm:$0xff]
        %v441 = vld [vmem:[%s213 + $0x1a8] sm:$0xff]
        %v442 = vld [vmem:[%s213 + $0x1b0] sm:$0xff]
        %v443 = vld [vmem:[%s213 + $0x1b8] sm:$0xff]
        %v444 = vld [vmem:[%s213 + $0x1c0] sm:$0xff]
        %v445 = vld [vmem:[%s213 + $0x1c8] sm:$0xff]
        %v446 = vld [vmem:[%s213 + $0x1d0] sm:$0xff]
        %v447 = vld [vmem:[%s213 + $0x1d8] sm:$0xff]
        %v448 = vld [vmem:[%s213 + $0x1e0] sm:$0xff]
        %v449 = vld [vmem:[%s213 + $0x1e8] sm:$0xff]
        %v450 = vld [vmem:[%s213 + $0x1f0] sm:$0xff]
        %v451 = vld [vmem:[%s213 + $0x1f8] sm:$0xff]
        %v452 = vld [vmem:[%s213 + $0x200] sm:$0xff]
        %v453 = vld [vmem:[%s213 + $0x208] sm:$0xff]
        %v454 = vld [vmem:[%s213 + $0x210] sm:$0xff]
        %v455 = vld [vmem:[%s213 + $0x218] sm:$0xff]
        %v456 = vld [vmem:[%s213 + $0x220] sm:$0xff]
        %v457 = vld [vmem:[%s213 + $0x228] sm:$0xff]
        %v458 = vld [vmem:[%s213 + $0x230] sm:$0xff]
        %v459 = vld [vmem:[%s213 + $0x238] sm:$0xff]
        %v460 = vld [vmem:[%s213 + $0x240] sm:$0xff]
        %v461 = vld [vmem:[%s213 + $0x248] sm:$0xff]
        %v462 = vld [vmem:[%s213 + $0x250] sm:$0xff]
        %v463 = vld [vmem:[%s213 + $0x258] sm:$0xff]
        %v464 = vld [vmem:[%s213 + $0x260] sm:$0xff]
        %v465 = vld [vmem:[%s213 + $0x268] sm:$0xff]
        %v466 = vld [vmem:[%s213 + $0x270] sm:$0xff]
        %v467 = vld [vmem:[%s213 + $0x278] sm:$0xff]
        %v468 = vld [vmem:[%s213 + $0x280] sm:$0xff]
        %v469 = vld [vmem:[%s213 + $0x288] sm:$0xff]
        %v470 = vld [vmem:[%s213 + $0x290] sm:$0xff]
        %v471 = vld [vmem:[%s213 + $0x298] sm:$0xff]
        %v472 = vld [vmem:[%s213 + $0x2a0] sm:$0xff]
        %v473 = vld [vmem:[%s213 + $0x2a8] sm:$0xff]
        %v474 = vld [vmem:[%s213 + $0x2b0] sm:$0xff]
        %v475 = vld [vmem:[%s213 + $0x2b8] sm:$0xff]
        %v476 = vld [vmem:[%s213 + $0x2c0] sm:$0xff]
        %v477 = vld [vmem:[%s213 + $0x2c8] sm:$0xff]
        %v478 = vld [vmem:[%s213 + $0x2d0] sm:$0xff]
        %v479 = vld [vmem:[%s213 + $0x2d8] sm:$0xff]
        %v480 = vld [vmem:[%s213 + $0x2e0] sm:$0xff]
        %v481 = vld [vmem:[%s213 + $0x2e8] sm:$0xff]
        %v482 = vld [vmem:[%s213 + $0x2f0] sm:$0xff]
        %v483 = vld [vmem:[%s213 + $0x2f8] sm:$0xff]
        %v484 = vld [vmem:[%s213 + $0x300] sm:$0xff]
        %v485 = vld [vmem:[%s213 + $0x308] sm:$0xff]
        %v486 = vld [vmem:[%s213 + $0x310] sm:$0xff]
        %v487 = vld [vmem:[%s213 + $0x318] sm:$0xff]
        %v488 = vld [vmem:[%s213 + $0x320] sm:$0xff]
        %v489 = vld [vmem:[%s213 + $0x328] sm:$0xff]
        %v490 = vld [vmem:[%s213 + $0x330] sm:$0xff]
        %v491 = vld [vmem:[%s213 + $0x338] sm:$0xff]
        %v492 = vld [vmem:[%s213 + $0x340] sm:$0xff]
        %v493 = vld [vmem:[%s213 + $0x348] sm:$0xff]
        %v494 = vld [vmem:[%s213 + $0x350] sm:$0xff]
        %v495 = vld [vmem:[%s213 + $0x358] sm:$0xff]
        %v496 = vld [vmem:[%s213 + $0x360] sm:$0xff]
        %v497 = vld [vmem:[%s213 + $0x368] sm:$0xff]
        %v498 = vld [vmem:[%s213 + $0x370] sm:$0xff]
        %v499 = vld [vmem:[%s213 + $0x378] sm:$0xff]
        %v500 = vld [vmem:[%s213 + $0x380] sm:$0xff]
        %v501 = vld [vmem:[%s213 + $0x388] sm:$0xff]
        %v502 = vld [vmem:[%s213 + $0x390] sm:$0xff]
        %v503 = vld [vmem:[%s213 + $0x398] sm:$0xff]
        %v504 = vld [vmem:[%s213 + $0x3a0] sm:$0xff]
        %v505 = vld [vmem:[%s213 + $0x3a8] sm:$0xff]
        %v506 = vld [vmem:[%s213 + $0x3b0] sm:$0xff]
        %v507 = vld [vmem:[%s213 + $0x3b8] sm:$0xff]
        %v508 = vld [vmem:[%s213 + $0x3c0] sm:$0xff]
        %v509 = vld [vmem:[%s213 + $0x3c8] sm:$0xff]
        %v510 = vld [vmem:[%s213 + $0x3d0] sm:$0xff]
        %v511 = vld [vmem:[%s213 + $0x3d8] sm:$0xff]
        %v512 = vld [vmem:[%s213 + $0x3e0] sm:$0xff]
        %v513 = vld [vmem:[%s213 + $0x3e8] sm:$0xff]
        %v514 = vld [vmem:[%s213 + $0x3f0] sm:$0xff]
        %v515 = vld [vmem:[%s213 + $0x3f8] sm:$0xff]
        %v516 = vld [vmem:[%s213 + $0x400] sm:$0xff]
        %v517 = vld [vmem:[%s213 + $0x408] sm:$0xff]
        %v518 = vld [vmem:[%s213 + $0x410] sm:$0xff]
        %v519 = vld [vmem:[%s213 + $0x418] sm:$0xff]
        %v520 = vld [vmem:[%s213 + $0x420] sm:$0xff]
        %v521 = vld [vmem:[%s213 + $0x428] sm:$0xff]
        %v522 = vld [vmem:[%s213 + $0x430] sm:$0xff]
        %v523 = vld [vmem:[%s213 + $0x438] sm:$0xff]
        %v524 = vld [vmem:[%s213 + $0x440] sm:$0xff]
        %v525 = vld [vmem:[%s213 + $0x448] sm:$0xff]
        %v526 = vld [vmem:[%s213 + $0x450] sm:$0xff]
        %v527 = vld [vmem:[%s213 + $0x458] sm:$0xff]
        %v528 = vld [vmem:[%s213 + $0x460] sm:$0xff]
        %v529 = vld [vmem:[%s213 + $0x468] sm:$0xff]
        %v530 = vld [vmem:[%s213 + $0x470] sm:$0xff]
        %v531 = vld [vmem:[%s213 + $0x478] sm:$0xff]
        %v532 = vld [vmem:[%s213 + $0x480] sm:$0xff]
        %v533 = vld [vmem:[%s213 + $0x488] sm:$0xff]
        %v534 = vld [vmem:[%s213 + $0x490] sm:$0xff]
        %v535 = vld [vmem:[%s213 + $0x498] sm:$0xff]
        %v536 = vld [vmem:[%s213 + $0x4a0] sm:$0xff]
        %v537 = vld [vmem:[%s213 + $0x4a8] sm:$0xff]
        %v538 = vld [vmem:[%s213 + $0x4b0] sm:$0xff]
        %v539 = vld [vmem:[%s213 + $0x4b8] sm:$0xff]
        %v540 = vld [vmem:[%s213 + $0x4c0] sm:$0xff]
        %v541 = vld [vmem:[%s213 + $0x4c8] sm:$0xff]
        %v542 = vld [vmem:[%s213 + $0x4d0] sm:$0xff]
        %v543 = vld [vmem:[%s213 + $0x4d8] sm:$0xff]
        %v544 = vld [vmem:[%s213 + $0x4e0] sm:$0xff]
        %v545 = vld [vmem:[%s213 + $0x4e8] sm:$0xff]
        %v546 = vld [vmem:[%s213 + $0x4f0] sm:$0xff]
        %v547 = vld [vmem:[%s213 + $0x4f8] sm:$0xff]
        %v548 = vld [vmem:[%s213 + $0x500] sm:$0xff]
        %v549 = vld [vmem:[%s213 + $0x508] sm:$0xff]
        %v550 = vld [vmem:[%s213 + $0x510] sm:$0xff]
        %v551 = vld [vmem:[%s213 + $0x518] sm:$0xff]
        %v552 = vld [vmem:[%s213 + $0x520] sm:$0xff]
        %v553 = vld [vmem:[%s213 + $0x528] sm:$0xff]
        %v554 = vld [vmem:[%s213 + $0x530] sm:$0xff]
        %v555 = vld [vmem:[%s213 + $0x538] sm:$0xff]
        %v556 = vld [vmem:[%s213 + $0x540] sm:$0xff]
        %v557 = vld [vmem:[%s213 + $0x548] sm:$0xff]
        %v558 = vld [vmem:[%s213 + $0x550] sm:$0xff]
        %v559 = vld [vmem:[%s213 + $0x558] sm:$0xff]
        %v560 = vld [vmem:[%s213 + $0x560] sm:$0xff]
        %v561 = vld [vmem:[%s213 + $0x568] sm:$0xff]
        %v562 = vld [vmem:[%s213 + $0x570] sm:$0xff]
        %v563 = vld [vmem:[%s213 + $0x578] sm:$0xff]
        %v564 = vld [vmem:[%s213 + $0x580] sm:$0xff]
        %v565 = vld [vmem:[%s213 + $0x588] sm:$0xff]
        %v566 = vld [vmem:[%s213 + $0x590] sm:$0xff]
        %v567 = vld [vmem:[%s213 + $0x598] sm:$0xff]
        %v568 = vld [vmem:[%s213 + $0x5a0] sm:$0xff]
        %v569 = vld [vmem:[%s213 + $0x5a8] sm:$0xff]
        %v570 = vld [vmem:[%s213 + $0x5b0] sm:$0xff]
        %v571 = vld [vmem:[%s213 + $0x5b8] sm:$0xff]
        %v572 = vld [vmem:[%s213 + $0x5c0] sm:$0xff]
        %v573 = vld [vmem:[%s213 + $0x5c8] sm:$0xff]
        %v574 = vld [vmem:[%s213 + $0x5d0] sm:$0xff]
        %v575 = vld [vmem:[%s213 + $0x5d8] sm:$0xff]
        %v576 = vld [vmem:[%s213 + $0x5e0] sm:$0xff]
        %v577 = vld [vmem:[%s213 + $0x5e8] sm:$0xff]
        %v578 = vld [vmem:[%s213 + $0x5f0] sm:$0xff]
        %v579 = vld [vmem:[%s213 + $0x5f8] sm:$0xff]
        %v580 = vld [vmem:[#allocation6] sm:$0xff]
        %v581 = vld [vmem:[#allocation6 + $0x8] sm:$0xff]
        %v582 = vld [vmem:[#allocation6 + $0x10] sm:$0xff]
        %v583 = vld [vmem:[#allocation6 + $0x18] sm:$0xff]
        %v584 = vld [vmem:[#allocation6 + $0x20] sm:$0xff]
        %v585 = vld [vmem:[#allocation6 + $0x28] sm:$0xff]
        %v586 = vld [vmem:[#allocation6 + $0x30] sm:$0xff]
        %v587 = vld [vmem:[#allocation6 + $0x38] sm:$0xff]
        %v588 = vld [vmem:[#allocation6 + $0x40] sm:$0xff]
        %v589 = vld [vmem:[#allocation6 + $0x48] sm:$0xff]
        %v590 = vld [vmem:[#allocation6 + $0x50] sm:$0xff]
        %v591 = vld [vmem:[#allocation6 + $0x58] sm:$0xff]
        %v592 = vld [vmem:[#allocation6 + $0x60] sm:$0xff]
        %v593 = vld [vmem:[#allocation6 + $0x68] sm:$0xff]
        %v594 = vld [vmem:[#allocation6 + $0x70] sm:$0xff]
        %v595 = vld [vmem:[#allocation6 + $0x78] sm:$0xff]
        %v596 = vld [vmem:[#allocation6 + $0x80] sm:$0xff]
        %v597 = vld [vmem:[#allocation6 + $0x88] sm:$0xff]
        %v598 = vld [vmem:[#allocation6 + $0x90] sm:$0xff]
        %v599 = vld [vmem:[#allocation6 + $0x98] sm:$0xff]
        %v600 = vld [vmem:[#allocation6 + $0xa0] sm:$0xff]
        %v601 = vld [vmem:[#allocation6 + $0xa8] sm:$0xff]
        %v602 = vld [vmem:[#allocation6 + $0xb0] sm:$0xff]
        %v603 = vld [vmem:[#allocation6 + $0xb8] sm:$0xff]
        %v604 = vld [vmem:[#allocation6 + $0xc0] sm:$0xff]
        %v605 = vld [vmem:[#allocation6 + $0xc8] sm:$0xff]
        %v606 = vld [vmem:[#allocation6 + $0xd0] sm:$0xff]
        %v607 = vld [vmem:[#allocation6 + $0xd8] sm:$0xff]
        %v608 = vld [vmem:[#allocation6 + $0xe0] sm:$0xff]
        %v609 = vld [vmem:[#allocation6 + $0xe8] sm:$0xff]
        %v610 = vld [vmem:[#allocation6 + $0xf0] sm:$0xff]
        %v611 = vld [vmem:[#allocation6 + $0xf8] sm:$0xff]
        %v612 = vld [vmem:[#allocation6 + $0x100] sm:$0xff]
        %v613 = vld [vmem:[#allocation6 + $0x108] sm:$0xff]
        %v614 = vld [vmem:[#allocation6 + $0x110] sm:$0xff]
        %v615 = vld [vmem:[#allocation6 + $0x118] sm:$0xff]
        %v616 = vld [vmem:[#allocation6 + $0x120] sm:$0xff]
        %v617 = vld [vmem:[#allocation6 + $0x128] sm:$0xff]
        %v618 = vld [vmem:[#allocation6 + $0x130] sm:$0xff]
        %v619 = vld [vmem:[#allocation6 + $0x138] sm:$0xff]
        %v620 = vld [vmem:[#allocation6 + $0x140] sm:$0xff]
        %v621 = vld [vmem:[#allocation6 + $0x148] sm:$0xff]
        %v622 = vld [vmem:[#allocation6 + $0x150] sm:$0xff]
        %v623 = vld [vmem:[#allocation6 + $0x158] sm:$0xff]
        %v624 = vld [vmem:[#allocation6 + $0x160] sm:$0xff]
        %v625 = vld [vmem:[#allocation6 + $0x168] sm:$0xff]
        %v626 = vld [vmem:[#allocation6 + $0x170] sm:$0xff]
        %v627 = vld [vmem:[#allocation6 + $0x178] sm:$0xff]
        %628 = vmatpush.msra.mxu0 %v595
        %629 = vmatpush.msra.mxu0 %v594
        %630 = vmatpush.msra.mxu0 %v593
        %631 = vmatpush.msra.mxu0 %v592
        %632 = vmatpush.msra.mxu0 %v591
        %633 = vmatpush.msra.mxu0 %v590
        %634 = vmatpush.msra.mxu0 %v589
        %635 = vmatpush.msra.mxu0 %v588
        %636 = vmatpush.msra.mxu0 %v587
        %637 = vmatpush.msra.mxu0 %v586
        %638 = vmatpush.msra.mxu0 %v585
        %639 = vmatpush.msra.mxu0 %v584
        %640 = vmatpush.msra.mxu0 %v583
        %641 = vmatpush.msra.mxu0 %v582
        %642 = vmatpush.msra.mxu0 %v581
        %643 = vmatpush.msra.mxu0 %v580
        %644 = vmatmul.f32.gmra.mxu0 %v388
        %v645 = vpop.f32.mrf.mxu0
        %v646 = vadd.f32 0.0, %v645
        %647 = vmatmul.f32.gmra.mxu0 %v391
        %v648 = vpop.f32.mrf.mxu0
        %v649 = vadd.f32 0.0, %v648
        %650 = vmatmul.f32.gmra.mxu0 %v394
        %v651 = vpop.f32.mrf.mxu0
        %v652 = vadd.f32 0.0, %v651
        %653 = vmatmul.f32.gmra.mxu0 %v397
        %v654 = vpop.f32.mrf.mxu0
        %v655 = vadd.f32 0.0, %v654
        %656 = vmatmul.f32.gmra.mxu0 %v400
        %v657 = vpop.f32.mrf.mxu0
        %v658 = vadd.f32 0.0, %v657
        %659 = vmatmul.f32.gmra.mxu0 %v403
        %v660 = vpop.f32.mrf.mxu0
        %v661 = vadd.f32 0.0, %v660
        %662 = vmatmul.f32.gmra.mxu0 %v406
        %v663 = vpop.f32.mrf.mxu0
        %v664 = vadd.f32 0.0, %v663
        %665 = vmatmul.f32.gmra.mxu0 %v409
        %v666 = vpop.f32.mrf.mxu0
        %v667 = vadd.f32 0.0, %v666
        %668 = vmatmul.f32.gmra.mxu0 %v412
        %v669 = vpop.f32.mrf.mxu0
        %v670 = vadd.f32 0.0, %v669
        %671 = vmatmul.f32.gmra.mxu0 %v415
        %v672 = vpop.f32.mrf.mxu0
        %v673 = vadd.f32 0.0, %v672
        %674 = vmatmul.f32.gmra.mxu0 %v418
        %v675 = vpop.f32.mrf.mxu0
        %v676 = vadd.f32 0.0, %v675
        %677 = vmatmul.f32.gmra.mxu0 %v421
        %v678 = vpop.f32.mrf.mxu0
        %v679 = vadd.f32 0.0, %v678
        %680 = vmatmul.f32.gmra.mxu0 %v424
        %v681 = vpop.f32.mrf.mxu0
        %v682 = vadd.f32 0.0, %v681
        %683 = vmatmul.f32.gmra.mxu0 %v427
        %v684 = vpop.f32.mrf.mxu0
        %v685 = vadd.f32 0.0, %v684
        %686 = vmatmul.f32.gmra.mxu0 %v430
        %v687 = vpop.f32.mrf.mxu0
        %v688 = vadd.f32 0.0, %v687
        %689 = vmatmul.f32.gmra.mxu0 %v433
        %v690 = vpop.f32.mrf.mxu0
        %v691 = vadd.f32 0.0, %v690
        %692 = vmatmul.f32.gmra.mxu0 %v436
        %v693 = vpop.f32.mrf.mxu0
        %v694 = vadd.f32 0.0, %v693
        %695 = vmatmul.f32.gmra.mxu0 %v439
        %v696 = vpop.f32.mrf.mxu0
        %v697 = vadd.f32 0.0, %v696
        %698 = vmatmul.f32.gmra.mxu0 %v442
        %v699 = vpop.f32.mrf.mxu0
        %v700 = vadd.f32 0.0, %v699
        %701 = vmatmul.f32.gmra.mxu0 %v445
        %v702 = vpop.f32.mrf.mxu0
        %v703 = vadd.f32 0.0, %v702
        %704 = vmatmul.f32.gmra.mxu0 %v448
        %v705 = vpop.f32.mrf.mxu0
        %v706 = vadd.f32 0.0, %v705
        %707 = vmatmul.f32.gmra.mxu0 %v451
        %v708 = vpop.f32.mrf.mxu0
        %v709 = vadd.f32 0.0, %v708
        %710 = vmatmul.f32.gmra.mxu0 %v454
        %v711 = vpop.f32.mrf.mxu0
        %v712 = vadd.f32 0.0, %v711
        %713 = vmatmul.f32.gmra.mxu0 %v457
        %v714 = vpop.f32.mrf.mxu0
        %v715 = vadd.f32 0.0, %v714
        %716 = vmatmul.f32.gmra.mxu0 %v460
        %v717 = vpop.f32.mrf.mxu0
        %v718 = vadd.f32 0.0, %v717
        %719 = vmatmul.f32.gmra.mxu0 %v463
        %v720 = vpop.f32.mrf.mxu0
        %v721 = vadd.f32 0.0, %v720
        %722 = vmatmul.f32.gmra.mxu0 %v466
        %v723 = vpop.f32.mrf.mxu0
        %v724 = vadd.f32 0.0, %v723
        %725 = vmatmul.f32.gmra.mxu0 %v469
        %v726 = vpop.f32.mrf.mxu0
        %v727 = vadd.f32 0.0, %v726
        %728 = vmatmul.f32.gmra.mxu0 %v472
        %v729 = vpop.f32.mrf.mxu0
        %v730 = vadd.f32 0.0, %v729
        %731 = vmatmul.f32.gmra.mxu0 %v475
        %v732 = vpop.f32.mrf.mxu0
        %v733 = vadd.f32 0.0, %v732
        %734 = vmatmul.f32.gmra.mxu0 %v478
        %v735 = vpop.f32.mrf.mxu0
        %v736 = vadd.f32 0.0, %v735
        %737 = vmatmul.f32.gmra.mxu0 %v481
        %v738 = vpop.f32.mrf.mxu0
        %v739 = vadd.f32 0.0, %v738
        %740 = vmatmul.f32.gmra.mxu0 %v484
        %v741 = vpop.f32.mrf.mxu0
        %v742 = vadd.f32 0.0, %v741
        %743 = vmatmul.f32.gmra.mxu0 %v487
        %v744 = vpop.f32.mrf.mxu0
        %v745 = vadd.f32 0.0, %v744
        %746 = vmatmul.f32.gmra.mxu0 %v490
        %v747 = vpop.f32.mrf.mxu0
        %v748 = vadd.f32 0.0, %v747
        %749 = vmatmul.f32.gmra.mxu0 %v493
        %v750 = vpop.f32.mrf.mxu0
        %v751 = vadd.f32 0.0, %v750
        %752 = vmatmul.f32.gmra.mxu0 %v496
        %v753 = vpop.f32.mrf.mxu0
        %v754 = vadd.f32 0.0, %v753
        %755 = vmatmul.f32.gmra.mxu0 %v499
        %v756 = vpop.f32.mrf.mxu0
        %v757 = vadd.f32 0.0, %v756
        %758 = vmatmul.f32.gmra.mxu0 %v502
        %v759 = vpop.f32.mrf.mxu0
        %v760 = vadd.f32 0.0, %v759
        %761 = vmatmul.f32.gmra.mxu0 %v505
        %v762 = vpop.f32.mrf.mxu0
        %v763 = vadd.f32 0.0, %v762
        %764 = vmatmul.f32.gmra.mxu0 %v508
        %v765 = vpop.f32.mrf.mxu0
        %v766 = vadd.f32 0.0, %v765
        %767 = vmatmul.f32.gmra.mxu0 %v511
        %v768 = vpop.f32.mrf.mxu0
        %v769 = vadd.f32 0.0, %v768
        %770 = vmatmul.f32.gmra.mxu0 %v514
        %v771 = vpop.f32.mrf.mxu0
        %v772 = vadd.f32 0.0, %v771
        %773 = vmatmul.f32.gmra.mxu0 %v517
        %v774 = vpop.f32.mrf.mxu0
        %v775 = vadd.f32 0.0, %v774
        %776 = vmatmul.f32.gmra.mxu0 %v520
        %v777 = vpop.f32.mrf.mxu0
        %v778 = vadd.f32 0.0, %v777
        %779 = vmatmul.f32.gmra.mxu0 %v523
        %v780 = vpop.f32.mrf.mxu0
        %v781 = vadd.f32 0.0, %v780
        %782 = vmatmul.f32.gmra.mxu0 %v526
        %v783 = vpop.f32.mrf.mxu0
        %v784 = vadd.f32 0.0, %v783
        %785 = vmatmul.f32.gmra.mxu0 %v529
        %v786 = vpop.f32.mrf.mxu0
        %v787 = vadd.f32 0.0, %v786
        %788 = vmatmul.f32.gmra.mxu0 %v532
        %v789 = vpop.f32.mrf.mxu0
        %v790 = vadd.f32 0.0, %v789
        %791 = vmatmul.f32.gmra.mxu0 %v535
        %v792 = vpop.f32.mrf.mxu0
        %v793 = vadd.f32 0.0, %v792
        %794 = vmatmul.f32.gmra.mxu0 %v538
        %v795 = vpop.f32.mrf.mxu0
        %v796 = vadd.f32 0.0, %v795
        %797 = vmatmul.f32.gmra.mxu0 %v541
        %v798 = vpop.f32.mrf.mxu0
        %v799 = vadd.f32 0.0, %v798
        %800 = vmatmul.f32.gmra.mxu0 %v544
        %v801 = vpop.f32.mrf.mxu0
        %v802 = vadd.f32 0.0, %v801
        %803 = vmatmul.f32.gmra.mxu0 %v547
        %v804 = vpop.f32.mrf.mxu0
        %v805 = vadd.f32 0.0, %v804
        %806 = vmatmul.f32.gmra.mxu0 %v550
        %v807 = vpop.f32.mrf.mxu0
        %v808 = vadd.f32 0.0, %v807
        %809 = vmatmul.f32.gmra.mxu0 %v553
        %v810 = vpop.f32.mrf.mxu0
        %v811 = vadd.f32 0.0, %v810
        %812 = vmatmul.f32.gmra.mxu0 %v556
        %v813 = vpop.f32.mrf.mxu0
        %v814 = vadd.f32 0.0, %v813
        %815 = vmatmul.f32.gmra.mxu0 %v559
        %v816 = vpop.f32.mrf.mxu0
        %v817 = vadd.f32 0.0, %v816
        %818 = vmatmul.f32.gmra.mxu0 %v562
        %v819 = vpop.f32.mrf.mxu0
        %v820 = vadd.f32 0.0, %v819
        %821 = vmatmul.f32.gmra.mxu0 %v565
        %v822 = vpop.f32.mrf.mxu0
        %v823 = vadd.f32 0.0, %v822
        %824 = vmatmul.f32.gmra.mxu0 %v568
        %v825 = vpop.f32.mrf.mxu0
        %v826 = vadd.f32 0.0, %v825
        %827 = vmatmul.f32.gmra.mxu0 %v571
        %v828 = vpop.f32.mrf.mxu0
        %v829 = vadd.f32 0.0, %v828
        %830 = vmatmul.f32.gmra.mxu0 %v574
        %v831 = vpop.f32.mrf.mxu0
        %v832 = vadd.f32 0.0, %v831
        %833 = vmatmul.f32.gmra.mxu0 %v577
        %v834 = vpop.f32.mrf.mxu0
        %v835 = vadd.f32 0.0, %v834
        %836 = vdwg.mxu0
        %837 = vmatpush.msra.mxu0 %v611
        %838 = vmatpush.msra.mxu0 %v610
        %839 = vmatpush.msra.mxu0 %v609
        %840 = vmatpush.msra.mxu0 %v608
        %841 = vmatpush.msra.mxu0 %v607
        %842 = vmatpush.msra.mxu0 %v606
        %843 = vmatpush.msra.mxu0 %v605
        %844 = vmatpush.msra.mxu0 %v604
        %845 = vmatpush.msra.mxu0 %v603
        %846 = vmatpush.msra.mxu0 %v602
        %847 = vmatpush.msra.mxu0 %v601
        %848 = vmatpush.msra.mxu0 %v600
        %849 = vmatpush.msra.mxu0 %v599
        %850 = vmatpush.msra.mxu0 %v598
        %851 = vmatpush.msra.mxu0 %v597
        %852 = vmatpush.msra.mxu0 %v596
        %853 = vmatmul.f32.gmra.mxu0 %v389
        %v854 = vpop.f32.mrf.mxu0
        %v855 = vadd.f32 %v646, %v854
        %856 = vmatmul.f32.gmra.mxu0 %v392
        %v857 = vpop.f32.mrf.mxu0
        %v858 = vadd.f32 %v649, %v857
        %859 = vmatmul.f32.gmra.mxu0 %v395
        %v860 = vpop.f32.mrf.mxu0
        %v861 = vadd.f32 %v652, %v860
        %862 = vmatmul.f32.gmra.mxu0 %v398
        %v863 = vpop.f32.mrf.mxu0
        %v864 = vadd.f32 %v655, %v863
        %865 = vmatmul.f32.gmra.mxu0 %v401
        %v866 = vpop.f32.mrf.mxu0
        %v867 = vadd.f32 %v658, %v866
        %868 = vmatmul.f32.gmra.mxu0 %v404
        %v869 = vpop.f32.mrf.mxu0
        %v870 = vadd.f32 %v661, %v869
        %871 = vmatmul.f32.gmra.mxu0 %v407
        %v872 = vpop.f32.mrf.mxu0
        %v873 = vadd.f32 %v664, %v872
        %874 = vmatmul.f32.gmra.mxu0 %v410
        %v875 = vpop.f32.mrf.mxu0
        %v876 = vadd.f32 %v667, %v875
        %877 = vmatmul.f32.gmra.mxu0 %v413
        %v878 = vpop.f32.mrf.mxu0
        %v879 = vadd.f32 %v670, %v878
        %880 = vmatmul.f32.gmra.mxu0 %v416
        %v881 = vpop.f32.mrf.mxu0
        %v882 = vadd.f32 %v673, %v881
        %883 = vmatmul.f32.gmra.mxu0 %v419
        %v884 = vpop.f32.mrf.mxu0
        %v885 = vadd.f32 %v676, %v884
        %886 = vmatmul.f32.gmra.mxu0 %v422
        %v887 = vpop.f32.mrf.mxu0
        %v888 = vadd.f32 %v679, %v887
        %889 = vmatmul.f32.gmra.mxu0 %v425
        %v890 = vpop.f32.mrf.mxu0
        %v891 = vadd.f32 %v682, %v890
        %892 = vmatmul.f32.gmra.mxu0 %v428
        %v893 = vpop.f32.mrf.mxu0
        %v894 = vadd.f32 %v685, %v893
        %895 = vmatmul.f32.gmra.mxu0 %v431
        %v896 = vpop.f32.mrf.mxu0
        %v897 = vadd.f32 %v688, %v896
        %898 = vmatmul.f32.gmra.mxu0 %v434
        %v899 = vpop.f32.mrf.mxu0
        %v900 = vadd.f32 %v691, %v899
        %901 = vmatmul.f32.gmra.mxu0 %v437
        %v902 = vpop.f32.mrf.mxu0
        %v903 = vadd.f32 %v694, %v902
        %904 = vmatmul.f32.gmra.mxu0 %v440
        %v905 = vpop.f32.mrf.mxu0
        %v906 = vadd.f32 %v697, %v905
        %907 = vmatmul.f32.gmra.mxu0 %v443
        %v908 = vpop.f32.mrf.mxu0
        %v909 = vadd.f32 %v700, %v908
        %910 = vmatmul.f32.gmra.mxu0 %v446
        %v911 = vpop.f32.mrf.mxu0
        %v912 = vadd.f32 %v703, %v911
        %913 = vmatmul.f32.gmra.mxu0 %v449
        %v914 = vpop.f32.mrf.mxu0
        %v915 = vadd.f32 %v706, %v914
        %916 = vmatmul.f32.gmra.mxu0 %v452
        %v917 = vpop.f32.mrf.mxu0
        %v918 = vadd.f32 %v709, %v917
        %919 = vmatmul.f32.gmra.mxu0 %v455
        %v920 = vpop.f32.mrf.mxu0
        %v921 = vadd.f32 %v712, %v920
        %922 = vmatmul.f32.gmra.mxu0 %v458
        %v923 = vpop.f32.mrf.mxu0
        %v924 = vadd.f32 %v715, %v923
        %925 = vmatmul.f32.gmra.mxu0 %v461
        %v926 = vpop.f32.mrf.mxu0
        %v927 = vadd.f32 %v718, %v926
        %928 = vmatmul.f32.gmra.mxu0 %v464
        %v929 = vpop.f32.mrf.mxu0
        %v930 = vadd.f32 %v721, %v929
        %931 = vmatmul.f32.gmra.mxu0 %v467
        %v932 = vpop.f32.mrf.mxu0
        %v933 = vadd.f32 %v724, %v932
        %934 = vmatmul.f32.gmra.mxu0 %v470
        %v935 = vpop.f32.mrf.mxu0
        %v936 = vadd.f32 %v727, %v935
        %937 = vmatmul.f32.gmra.mxu0 %v473
        %v938 = vpop.f32.mrf.mxu0
        %v939 = vadd.f32 %v730, %v938
        %940 = vmatmul.f32.gmra.mxu0 %v476
        %v941 = vpop.f32.mrf.mxu0
        %v942 = vadd.f32 %v733, %v941
        %943 = vmatmul.f32.gmra.mxu0 %v479
        %v944 = vpop.f32.mrf.mxu0
        %v945 = vadd.f32 %v736, %v944
        %946 = vmatmul.f32.gmra.mxu0 %v482
        %v947 = vpop.f32.mrf.mxu0
        %v948 = vadd.f32 %v739, %v947
        %949 = vmatmul.f32.gmra.mxu0 %v485
        %v950 = vpop.f32.mrf.mxu0
        %v951 = vadd.f32 %v742, %v950
        %952 = vmatmul.f32.gmra.mxu0 %v488
        %v953 = vpop.f32.mrf.mxu0
        %v954 = vadd.f32 %v745, %v953
        %955 = vmatmul.f32.gmra.mxu0 %v491
        %v956 = vpop.f32.mrf.mxu0
        %v957 = vadd.f32 %v748, %v956
        %958 = vmatmul.f32.gmra.mxu0 %v494
        %v959 = vpop.f32.mrf.mxu0
        %v960 = vadd.f32 %v751, %v959
        %961 = vmatmul.f32.gmra.mxu0 %v497
        %v962 = vpop.f32.mrf.mxu0
        %v963 = vadd.f32 %v754, %v962
        %964 = vmatmul.f32.gmra.mxu0 %v500
        %v965 = vpop.f32.mrf.mxu0
        %v966 = vadd.f32 %v757, %v965
        %967 = vmatmul.f32.gmra.mxu0 %v503
        %v968 = vpop.f32.mrf.mxu0
        %v969 = vadd.f32 %v760, %v968
        %970 = vmatmul.f32.gmra.mxu0 %v506
        %v971 = vpop.f32.mrf.mxu0
        %v972 = vadd.f32 %v763, %v971
        %973 = vmatmul.f32.gmra.mxu0 %v509
        %v974 = vpop.f32.mrf.mxu0
        %v975 = vadd.f32 %v766, %v974
        %976 = vmatmul.f32.gmra.mxu0 %v512
        %v977 = vpop.f32.mrf.mxu0
        %v978 = vadd.f32 %v769, %v977
        %979 = vmatmul.f32.gmra.mxu0 %v515
        %v980 = vpop.f32.mrf.mxu0
        %v981 = vadd.f32 %v772, %v980
        %982 = vmatmul.f32.gmra.mxu0 %v518
        %v983 = vpop.f32.mrf.mxu0
        %v984 = vadd.f32 %v775, %v983
        %985 = vmatmul.f32.gmra.mxu0 %v521
        %v986 = vpop.f32.mrf.mxu0
        %v987 = vadd.f32 %v778, %v986
        %988 = vmatmul.f32.gmra.mxu0 %v524
        %v989 = vpop.f32.mrf.mxu0
        %v990 = vadd.f32 %v781, %v989
        %991 = vmatmul.f32.gmra.mxu0 %v527
        %v992 = vpop.f32.mrf.mxu0
        %v993 = vadd.f32 %v784, %v992
        %994 = vmatmul.f32.gmra.mxu0 %v530
        %v995 = vpop.f32.mrf.mxu0
        %v996 = vadd.f32 %v787, %v995
        %997 = vmatmul.f32.gmra.mxu0 %v533
        %v998 = vpop.f32.mrf.mxu0
        %v999 = vadd.f32 %v790, %v998
        %1000 = vmatmul.f32.gmra.mxu0 %v536
        %v1001 = vpop.f32.mrf.mxu0
        %v1002 = vadd.f32 %v793, %v1001
        %1003 = vmatmul.f32.gmra.mxu0 %v539
        %v1004 = vpop.f32.mrf.mxu0
        %v1005 = vadd.f32 %v796, %v1004
        %1006 = vmatmul.f32.gmra.mxu0 %v542
        %v1007 = vpop.f32.mrf.mxu0
        %v1008 = vadd.f32 %v799, %v1007
        %1009 = vmatmul.f32.gmra.mxu0 %v545
        %v1010 = vpop.f32.mrf.mxu0
        %v1011 = vadd.f32 %v802, %v1010
        %1012 = vmatmul.f32.gmra.mxu0 %v548
        %v1013 = vpop.f32.mrf.mxu0
        %v1014 = vadd.f32 %v805, %v1013
        %1015 = vmatmul.f32.gmra.mxu0 %v551
        %v1016 = vpop.f32.mrf.mxu0
        %v1017 = vadd.f32 %v808, %v1016
        %1018 = vmatmul.f32.gmra.mxu0 %v554
        %v1019 = vpop.f32.mrf.mxu0
        %v1020 = vadd.f32 %v811, %v1019
        %1021 = vmatmul.f32.gmra.mxu0 %v557
        %v1022 = vpop.f32.mrf.mxu0
        %v1023 = vadd.f32 %v814, %v1022
        %1024 = vmatmul.f32.gmra.mxu0 %v560
        %v1025 = vpop.f32.mrf.mxu0
        %v1026 = vadd.f32 %v817, %v1025
        %1027 = vmatmul.f32.gmra.mxu0 %v563
        %v1028 = vpop.f32.mrf.mxu0
        %v1029 = vadd.f32 %v820, %v1028
        %1030 = vmatmul.f32.gmra.mxu0 %v566
        %v1031 = vpop.f32.mrf.mxu0
        %v1032 = vadd.f32 %v823, %v1031
        %1033 = vmatmul.f32.gmra.mxu0 %v569
        %v1034 = vpop.f32.mrf.mxu0
        %v1035 = vadd.f32 %v826, %v1034
        %1036 = vmatmul.f32.gmra.mxu0 %v572
        %v1037 = vpop.f32.mrf.mxu0
        %v1038 = vadd.f32 %v829, %v1037
        %1039 = vmatmul.f32.gmra.mxu0 %v575
        %v1040 = vpop.f32.mrf.mxu0
        %v1041 = vadd.f32 %v832, %v1040
        %1042 = vmatmul.f32.gmra.mxu0 %v578
        %v1043 = vpop.f32.mrf.mxu0
        %v1044 = vadd.f32 %v835, %v1043
        %1045 = vdwg.mxu0
        %1046 = vmatpush.msra.mxu0 %v627
        %1047 = vmatpush.msra.mxu0 %v626
        %1048 = vmatpush.msra.mxu0 %v625
        %1049 = vmatpush.msra.mxu0 %v624
        %1050 = vmatpush.msra.mxu0 %v623
        %1051 = vmatpush.msra.mxu0 %v622
        %1052 = vmatpush.msra.mxu0 %v621
        %1053 = vmatpush.msra.mxu0 %v620
        %1054 = vmatpush.msra.mxu0 %v619
        %1055 = vmatpush.msra.mxu0 %v618
        %1056 = vmatpush.msra.mxu0 %v617
        %1057 = vmatpush.msra.mxu0 %v616
        %1058 = vmatpush.msra.mxu0 %v615
        %1059 = vmatpush.msra.mxu0 %v614
        %1060 = vmatpush.msra.mxu0 %v613
        %1061 = vmatpush.msra.mxu0 %v612
        %1062 = vmatmul.f32.gmra.mxu0 %v390
        %v1063 = vpop.f32.mrf.mxu0
        %v1064 = vadd.f32 %v855, %v1063
        %1065 = vmatmul.f32.gmra.mxu0 %v393
        %v1066 = vpop.f32.mrf.mxu0
        %v1067 = vadd.f32 %v858, %v1066
        %1068 = vmatmul.f32.gmra.mxu0 %v396
        %v1069 = vpop.f32.mrf.mxu0
        %v1070 = vadd.f32 %v861, %v1069
        %1071 = vmatmul.f32.gmra.mxu0 %v399
        %v1072 = vpop.f32.mrf.mxu0
        %v1073 = vadd.f32 %v864, %v1072
        %1074 = vmatmul.f32.gmra.mxu0 %v402
        %v1075 = vpop.f32.mrf.mxu0
        %v1076 = vadd.f32 %v867, %v1075
        %1077 = vmatmul.f32.gmra.mxu0 %v405
        %v1078 = vpop.f32.mrf.mxu0
        %v1079 = vadd.f32 %v870, %v1078
        %1080 = vmatmul.f32.gmra.mxu0 %v408
        %v1081 = vpop.f32.mrf.mxu0
        %v1082 = vadd.f32 %v873, %v1081
        %1083 = vmatmul.f32.gmra.mxu0 %v411
        %v1084 = vpop.f32.mrf.mxu0
        %v1085 = vadd.f32 %v876, %v1084
        %1086 = vmatmul.f32.gmra.mxu0 %v414
        %v1087 = vpop.f32.mrf.mxu0
        %v1088 = vadd.f32 %v879, %v1087
        %1089 = vmatmul.f32.gmra.mxu0 %v417
        %v1090 = vpop.f32.mrf.mxu0
        %v1091 = vadd.f32 %v882, %v1090
        %1092 = vmatmul.f32.gmra.mxu0 %v420
        %v1093 = vpop.f32.mrf.mxu0
        %v1094 = vadd.f32 %v885, %v1093
        %1095 = vmatmul.f32.gmra.mxu0 %v423
        %v1096 = vpop.f32.mrf.mxu0
        %v1097 = vadd.f32 %v888, %v1096
        %1098 = vmatmul.f32.gmra.mxu0 %v426
        %v1099 = vpop.f32.mrf.mxu0
        %v1100 = vadd.f32 %v891, %v1099
        %1101 = vmatmul.f32.gmra.mxu0 %v429
        %v1102 = vpop.f32.mrf.mxu0
        %v1103 = vadd.f32 %v894, %v1102
        %1104 = vmatmul.f32.gmra.mxu0 %v432
        %v1105 = vpop.f32.mrf.mxu0
        %v1106 = vadd.f32 %v897, %v1105
        %1107 = vmatmul.f32.gmra.mxu0 %v435
        %v1108 = vpop.f32.mrf.mxu0
        %v1109 = vadd.f32 %v900, %v1108
        %1110 = vmatmul.f32.gmra.mxu0 %v438
        %v1111 = vpop.f32.mrf.mxu0
        %v1112 = vadd.f32 %v903, %v1111
        %1113 = vmatmul.f32.gmra.mxu0 %v441
        %v1114 = vpop.f32.mrf.mxu0
        %v1115 = vadd.f32 %v906, %v1114
        %1116 = vmatmul.f32.gmra.mxu0 %v444
        %v1117 = vpop.f32.mrf.mxu0
        %v1118 = vadd.f32 %v909, %v1117
        %1119 = vmatmul.f32.gmra.mxu0 %v447
        %v1120 = vpop.f32.mrf.mxu0
        %v1121 = vadd.f32 %v912, %v1120
        %1122 = vmatmul.f32.gmra.mxu0 %v450
        %v1123 = vpop.f32.mrf.mxu0
        %v1124 = vadd.f32 %v915, %v1123
        %1125 = vmatmul.f32.gmra.mxu0 %v453
        %v1126 = vpop.f32.mrf.mxu0
        %v1127 = vadd.f32 %v918, %v1126
        %1128 = vmatmul.f32.gmra.mxu0 %v456
        %v1129 = vpop.f32.mrf.mxu0
        %v1130 = vadd.f32 %v921, %v1129
        %1131 = vmatmul.f32.gmra.mxu0 %v459
        %v1132 = vpop.f32.mrf.mxu0
        %v1133 = vadd.f32 %v924, %v1132
        %1134 = vmatmul.f32.gmra.mxu0 %v462
        %v1135 = vpop.f32.mrf.mxu0
        %v1136 = vadd.f32 %v927, %v1135
        %1137 = vmatmul.f32.gmra.mxu0 %v465
        %v1138 = vpop.f32.mrf.mxu0
        %v1139 = vadd.f32 %v930, %v1138
        %1140 = vmatmul.f32.gmra.mxu0 %v468
        %v1141 = vpop.f32.mrf.mxu0
        %v1142 = vadd.f32 %v933, %v1141
        %1143 = vmatmul.f32.gmra.mxu0 %v471
        %v1144 = vpop.f32.mrf.mxu0
        %v1145 = vadd.f32 %v936, %v1144
        %1146 = vmatmul.f32.gmra.mxu0 %v474
        %v1147 = vpop.f32.mrf.mxu0
        %v1148 = vadd.f32 %v939, %v1147
        %1149 = vmatmul.f32.gmra.mxu0 %v477
        %v1150 = vpop.f32.mrf.mxu0
        %v1151 = vadd.f32 %v942, %v1150
        %1152 = vmatmul.f32.gmra.mxu0 %v480
        %v1153 = vpop.f32.mrf.mxu0
        %v1154 = vadd.f32 %v945, %v1153
        %1155 = vmatmul.f32.gmra.mxu0 %v483
        %v1156 = vpop.f32.mrf.mxu0
        %v1157 = vadd.f32 %v948, %v1156
        %1158 = vmatmul.f32.gmra.mxu0 %v486
        %v1159 = vpop.f32.mrf.mxu0
        %v1160 = vadd.f32 %v951, %v1159
        %1161 = vmatmul.f32.gmra.mxu0 %v489
        %v1162 = vpop.f32.mrf.mxu0
        %v1163 = vadd.f32 %v954, %v1162
        %1164 = vmatmul.f32.gmra.mxu0 %v492
        %v1165 = vpop.f32.mrf.mxu0
        %v1166 = vadd.f32 %v957, %v1165
        %1167 = vmatmul.f32.gmra.mxu0 %v495
        %v1168 = vpop.f32.mrf.mxu0
        %v1169 = vadd.f32 %v960, %v1168
        %1170 = vmatmul.f32.gmra.mxu0 %v498
        %v1171 = vpop.f32.mrf.mxu0
        %v1172 = vadd.f32 %v963, %v1171
        %1173 = vmatmul.f32.gmra.mxu0 %v501
        %v1174 = vpop.f32.mrf.mxu0
        %v1175 = vadd.f32 %v966, %v1174
        %1176 = vmatmul.f32.gmra.mxu0 %v504
        %v1177 = vpop.f32.mrf.mxu0
        %v1178 = vadd.f32 %v969, %v1177
        %1179 = vmatmul.f32.gmra.mxu0 %v507
        %v1180 = vpop.f32.mrf.mxu0
        %v1181 = vadd.f32 %v972, %v1180
        %1182 = vmatmul.f32.gmra.mxu0 %v510
        %v1183 = vpop.f32.mrf.mxu0
        %v1184 = vadd.f32 %v975, %v1183
        %1185 = vmatmul.f32.gmra.mxu0 %v513
        %v1186 = vpop.f32.mrf.mxu0
        %v1187 = vadd.f32 %v978, %v1186
        %1188 = vmatmul.f32.gmra.mxu0 %v516
        %v1189 = vpop.f32.mrf.mxu0
        %v1190 = vadd.f32 %v981, %v1189
        %1191 = vmatmul.f32.gmra.mxu0 %v519
        %v1192 = vpop.f32.mrf.mxu0
        %v1193 = vadd.f32 %v984, %v1192
        %1194 = vmatmul.f32.gmra.mxu0 %v522
        %v1195 = vpop.f32.mrf.mxu0
        %v1196 = vadd.f32 %v987, %v1195
        %1197 = vmatmul.f32.gmra.mxu0 %v525
        %v1198 = vpop.f32.mrf.mxu0
        %v1199 = vadd.f32 %v990, %v1198
        %1200 = vmatmul.f32.gmra.mxu0 %v528
        %v1201 = vpop.f32.mrf.mxu0
        %v1202 = vadd.f32 %v993, %v1201
        %1203 = vmatmul.f32.gmra.mxu0 %v531
        %v1204 = vpop.f32.mrf.mxu0
        %v1205 = vadd.f32 %v996, %v1204
        %1206 = vmatmul.f32.gmra.mxu0 %v534
        %v1207 = vpop.f32.mrf.mxu0
        %v1208 = vadd.f32 %v999, %v1207
        %1209 = vmatmul.f32.gmra.mxu0 %v537
        %v1210 = vpop.f32.mrf.mxu0
        %v1211 = vadd.f32 %v1002, %v1210
        %1212 = vmatmul.f32.gmra.mxu0 %v540
        %v1213 = vpop.f32.mrf.mxu0
        %v1214 = vadd.f32 %v1005, %v1213
        %1215 = vmatmul.f32.gmra.mxu0 %v543
        %v1216 = vpop.f32.mrf.mxu0
        %v1217 = vadd.f32 %v1008, %v1216
        %1218 = vmatmul.f32.gmra.mxu0 %v546
        %v1219 = vpop.f32.mrf.mxu0
        %v1220 = vadd.f32 %v1011, %v1219
        %1221 = vmatmul.f32.gmra.mxu0 %v549
        %v1222 = vpop.f32.mrf.mxu0
        %v1223 = vadd.f32 %v1014, %v1222
        %1224 = vmatmul.f32.gmra.mxu0 %v552
        %v1225 = vpop.f32.mrf.mxu0
        %v1226 = vadd.f32 %v1017, %v1225
        %1227 = vmatmul.f32.gmra.mxu0 %v555
        %v1228 = vpop.f32.mrf.mxu0
        %v1229 = vadd.f32 %v1020, %v1228
        %1230 = vmatmul.f32.gmra.mxu0 %v558
        %v1231 = vpop.f32.mrf.mxu0
        %v1232 = vadd.f32 %v1023, %v1231
        %1233 = vmatmul.f32.gmra.mxu0 %v561
        %v1234 = vpop.f32.mrf.mxu0
        %v1235 = vadd.f32 %v1026, %v1234
        %1236 = vmatmul.f32.gmra.mxu0 %v564
        %v1237 = vpop.f32.mrf.mxu0
        %v1238 = vadd.f32 %v1029, %v1237
        %1239 = vmatmul.f32.gmra.mxu0 %v567
        %v1240 = vpop.f32.mrf.mxu0
        %v1241 = vadd.f32 %v1032, %v1240
        %1242 = vmatmul.f32.gmra.mxu0 %v570
        %v1243 = vpop.f32.mrf.mxu0
        %v1244 = vadd.f32 %v1035, %v1243
        %1245 = vmatmul.f32.gmra.mxu0 %v573
        %v1246 = vpop.f32.mrf.mxu0
        %v1247 = vadd.f32 %v1038, %v1246
        %1248 = vmatmul.f32.gmra.mxu0 %v576
        %v1249 = vpop.f32.mrf.mxu0
        %v1250 = vadd.f32 %v1041, %v1249
        %1251 = vmatmul.f32.gmra.mxu0 %v579
        %v1252 = vpop.f32.mrf.mxu0
        %v1253 = vadd.f32 %v1044, %v1252
        %1254 = vdwg.mxu0
        %v1255 = vadd.f32 %v324, %v1064
        %v1256 = vadd.f32 %v325, %v1067
        %v1257 = vadd.f32 %v326, %v1070
        %v1258 = vadd.f32 %v327, %v1073
        %v1259 = vadd.f32 %v328, %v1076
        %v1260 = vadd.f32 %v329, %v1079
        %v1261 = vadd.f32 %v330, %v1082
        %v1262 = vadd.f32 %v331, %v1085
        %v1263 = vadd.f32 %v332, %v1088
        %v1264 = vadd.f32 %v333, %v1091
        %v1265 = vadd.f32 %v334, %v1094
        %v1266 = vadd.f32 %v335, %v1097
        %v1267 = vadd.f32 %v336, %v1100
        %v1268 = vadd.f32 %v337, %v1103
        %v1269 = vadd.f32 %v338, %v1106
        %v1270 = vadd.f32 %v339, %v1109
        %v1271 = vadd.f32 %v340, %v1112
        %v1272 = vadd.f32 %v341, %v1115
        %v1273 = vadd.f32 %v342, %v1118
        %v1274 = vadd.f32 %v343, %v1121
        %v1275 = vadd.f32 %v344, %v1124
        %v1276 = vadd.f32 %v345, %v1127
        %v1277 = vadd.f32 %v346, %v1130
        %v1278 = vadd.f32 %v347, %v1133
        %v1279 = vadd.f32 %v348, %v1136
        %v1280 = vadd.f32 %v349, %v1139
        %v1281 = vadd.f32 %v350, %v1142
        %v1282 = vadd.f32 %v351, %v1145
        %v1283 = vadd.f32 %v352, %v1148
        %v1284 = vadd.f32 %v353, %v1151
        %v1285 = vadd.f32 %v354, %v1154
        %v1286 = vadd.f32 %v355, %v1157
        %v1287 = vadd.f32 %v356, %v1160
        %v1288 = vadd.f32 %v357, %v1163
        %v1289 = vadd.f32 %v358, %v1166
        %v1290 = vadd.f32 %v359, %v1169
        %v1291 = vadd.f32 %v360, %v1172
        %v1292 = vadd.f32 %v361, %v1175
        %v1293 = vadd.f32 %v362, %v1178
        %v1294 = vadd.f32 %v363, %v1181
        %v1295 = vadd.f32 %v364, %v1184
        %v1296 = vadd.f32 %v365, %v1187
        %v1297 = vadd.f32 %v366, %v1190
        %v1298 = vadd.f32 %v367, %v1193
        %v1299 = vadd.f32 %v368, %v1196
        %v1300 = vadd.f32 %v369, %v1199
        %v1301 = vadd.f32 %v370, %v1202
        %v1302 = vadd.f32 %v371, %v1205
        %v1303 = vadd.f32 %v372, %v1208
        %v1304 = vadd.f32 %v373, %v1211
        %v1305 = vadd.f32 %v374, %v1214
        %v1306 = vadd.f32 %v375, %v1217
        %v1307 = vadd.f32 %v376, %v1220
        %v1308 = vadd.f32 %v377, %v1223
        %v1309 = vadd.f32 %v378, %v1226
        %v1310 = vadd.f32 %v379, %v1229
        %v1311 = vadd.f32 %v380, %v1232
        %v1312 = vadd.f32 %v381, %v1235
        %v1313 = vadd.f32 %v382, %v1238
        %v1314 = vadd.f32 %v383, %v1241
        %v1315 = vadd.f32 %v384, %v1244
        %v1316 = vadd.f32 %v385, %v1247
        %v1317 = vadd.f32 %v386, %v1250
        %v1318 = vadd.f32 %v387, %v1253
        %1319 = vst [vmem:[#allocation2] sm:$0xff] %v1255
        %1320 = vst [vmem:[#allocation2 + $0x8] sm:$0xff] %v1256
        %1321 = vst [vmem:[#allocation2 + $0x10] sm:$0xff] %v1257
        %1322 = vst [vmem:[#allocation2 + $0x18] sm:$0xff] %v1258
        %1323 = vst [vmem:[#allocation2 + $0x20] sm:$0xff] %v1259
        %1324 = vst [vmem:[#allocation2 + $0x28] sm:$0xff] %v1260
        %1325 = vst [vmem:[#allocation2 + $0x30] sm:$0xff] %v1261
        %1326 = vst [vmem:[#allocation2 + $0x38] sm:$0xff] %v1262
        %1327 = vst [vmem:[#allocation2 + $0x40] sm:$0xff] %v1263
        %1328 = vst [vmem:[#allocation2 + $0x48] sm:$0xff] %v1264
        %1329 = vst [vmem:[#allocation2 + $0x50] sm:$0xff] %v1265
        %1330 = vst [vmem:[#allocation2 + $0x58] sm:$0xff] %v1266
        %1331 = vst [vmem:[#allocation2 + $0x60] sm:$0xff] %v1267
        %1332 = vst [vmem:[#allocation2 + $0x68] sm:$0xff] %v1268
        %1333 = vst [vmem:[#allocation2 + $0x70] sm:$0xff] %v1269
        %1334 = vst [vmem:[#allocation2 + $0x78] sm:$0xff] %v1270
        %1335 = vst [vmem:[#allocation2 + $0x80] sm:$0xff] %v1271
        %1336 = vst [vmem:[#allocation2 + $0x88] sm:$0xff] %v1272
        %1337 = vst [vmem:[#allocation2 + $0x90] sm:$0xff] %v1273
        %1338 = vst [vmem:[#allocation2 + $0x98] sm:$0xff] %v1274
        %1339 = vst [vmem:[#allocation2 + $0xa0] sm:$0xff] %v1275
        %1340 = vst [vmem:[#allocation2 + $0xa8] sm:$0xff] %v1276
        %1341 = vst [vmem:[#allocation2 + $0xb0] sm:$0xff] %v1277
        %1342 = vst [vmem:[#allocation2 + $0xb8] sm:$0xff] %v1278
        %1343 = vst [vmem:[#allocation2 + $0xc0] sm:$0xff] %v1279
        %1344 = vst [vmem:[#allocation2 + $0xc8] sm:$0xff] %v1280
        %1345 = vst [vmem:[#allocation2 + $0xd0] sm:$0xff] %v1281
        %1346 = vst [vmem:[#allocation2 + $0xd8] sm:$0xff] %v1282
        %1347 = vst [vmem:[#allocation2 + $0xe0] sm:$0xff] %v1283
        %1348 = vst [vmem:[#allocation2 + $0xe8] sm:$0xff] %v1284
        %1349 = vst [vmem:[#allocation2 + $0xf0] sm:$0xff] %v1285
        %1350 = vst [vmem:[#allocation2 + $0xf8] sm:$0xff] %v1286
        %1351 = vst [vmem:[#allocation2 + $0x100] sm:$0xff] %v1287
        %1352 = vst [vmem:[#allocation2 + $0x108] sm:$0xff] %v1288
        %1353 = vst [vmem:[#allocation2 + $0x110] sm:$0xff] %v1289
        %1354 = vst [vmem:[#allocation2 + $0x118] sm:$0xff] %v1290
        %1355 = vst [vmem:[#allocation2 + $0x120] sm:$0xff] %v1291
        %1356 = vst [vmem:[#allocation2 + $0x128] sm:$0xff] %v1292
        %1357 = vst [vmem:[#allocation2 + $0x130] sm:$0xff] %v1293
        %1358 = vst [vmem:[#allocation2 + $0x138] sm:$0xff] %v1294
        %1359 = vst [vmem:[#allocation2 + $0x140] sm:$0xff] %v1295
        %1360 = vst [vmem:[#allocation2 + $0x148] sm:$0xff] %v1296
        %1361 = vst [vmem:[#allocation2 + $0x150] sm:$0xff] %v1297
        %1362 = vst [vmem:[#allocation2 + $0x158] sm:$0xff] %v1298
        %1363 = vst [vmem:[#allocation2 + $0x160] sm:$0xff] %v1299
        %1364 = vst [vmem:[#allocation2 + $0x168] sm:$0xff] %v1300
        %1365 = vst [vmem:[#allocation2 + $0x170] sm:$0xff] %v1301
        %1366 = vst [vmem:[#allocation2 + $0x178] sm:$0xff] %v1302
        %1367 = vst [vmem:[#allocation2 + $0x180] sm:$0xff] %v1303
        %1368 = vst [vmem:[#allocation2 + $0x188] sm:$0xff] %v1304
        %1369 = vst [vmem:[#allocation2 + $0x190] sm:$0xff] %v1305
        %1370 = vst [vmem:[#allocation2 + $0x198] sm:$0xff] %v1306
        %1371 = vst [vmem:[#allocation2 + $0x1a0] sm:$0xff] %v1307
        %1372 = vst [vmem:[#allocation2 + $0x1a8] sm:$0xff] %v1308
        %1373 = vst [vmem:[#allocation2 + $0x1b0] sm:$0xff] %v1309
        %1374 = vst [vmem:[#allocation2 + $0x1b8] sm:$0xff] %v1310
        %1375 = vst [vmem:[#allocation2 + $0x1c0] sm:$0xff] %v1311
        %1376 = vst [vmem:[#allocation2 + $0x1c8] sm:$0xff] %v1312
        %1377 = vst [vmem:[#allocation2 + $0x1d0] sm:$0xff] %v1313
        %1378 = vst [vmem:[#allocation2 + $0x1d8] sm:$0xff] %v1314
        %1379 = vst [vmem:[#allocation2 + $0x1e0] sm:$0xff] %v1315
        %1380 = vst [vmem:[#allocation2 + $0x1e8] sm:$0xff] %v1316
        %1381 = vst [vmem:[#allocation2 + $0x1f0] sm:$0xff] %v1317
        %1382 = vst [vmem:[#allocation2 + $0x1f8] sm:$0xff] %v1318
        // Predicated region
        $region49: #{tpu_custom_call.1} parent=31 // pred_check
          %p1383 = pneg %p251
        $region50: #{tpu_custom_call.1} parent=31 // pred_check_branch
          %1385 = sbr.rel (%p1383) target = $region52
        $region51: #{tpu_custom_call.1} parent=31 // pred_region
          %v1386 = vld [vmem:[#allocation2] sm:$0xff]
          %v1387 = vld [vmem:[#allocation2 + $0x8] sm:$0xff]
          %v1388 = vld [vmem:[#allocation2 + $0x10] sm:$0xff]
          %v1389 = vld [vmem:[#allocation2 + $0x18] sm:$0xff]
          %v1390 = vld [vmem:[#allocation2 + $0x20] sm:$0xff]
          %v1391 = vld [vmem:[#allocation2 + $0x28] sm:$0xff]
          %v1392 = vld [vmem:[#allocation2 + $0x30] sm:$0xff]
          %v1393 = vld [vmem:[#allocation2 + $0x38] sm:$0xff]
          %v1394 = vld [vmem:[#allocation2 + $0x40] sm:$0xff]
          %v1395 = vld [vmem:[#allocation2 + $0x48] sm:$0xff]
          %v1396 = vld [vmem:[#allocation2 + $0x50] sm:$0xff]
          %v1397 = vld [vmem:[#allocation2 + $0x58] sm:$0xff]
          %v1398 = vld [vmem:[#allocation2 + $0x60] sm:$0xff]
          %v1399 = vld [vmem:[#allocation2 + $0x68] sm:$0xff]
          %v1400 = vld [vmem:[#allocation2 + $0x70] sm:$0xff]
          %v1401 = vld [vmem:[#allocation2 + $0x78] sm:$0xff]
          %v1402 = vld [vmem:[#allocation2 + $0x80] sm:$0xff]
          %v1403 = vld [vmem:[#allocation2 + $0x88] sm:$0xff]
          %v1404 = vld [vmem:[#allocation2 + $0x90] sm:$0xff]
          %v1405 = vld [vmem:[#allocation2 + $0x98] sm:$0xff]
          %v1406 = vld [vmem:[#allocation2 + $0xa0] sm:$0xff]
          %v1407 = vld [vmem:[#allocation2 + $0xa8] sm:$0xff]
          %v1408 = vld [vmem:[#allocation2 + $0xb0] sm:$0xff]
          %v1409 = vld [vmem:[#allocation2 + $0xb8] sm:$0xff]
          %v1410 = vld [vmem:[#allocation2 + $0xc0] sm:$0xff]
          %v1411 = vld [vmem:[#allocation2 + $0xc8] sm:$0xff]
          %v1412 = vld [vmem:[#allocation2 + $0xd0] sm:$0xff]
          %v1413 = vld [vmem:[#allocation2 + $0xd8] sm:$0xff]
          %v1414 = vld [vmem:[#allocation2 + $0xe0] sm:$0xff]
          %v1415 = vld [vmem:[#allocation2 + $0xe8] sm:$0xff]
          %v1416 = vld [vmem:[#allocation2 + $0xf0] sm:$0xff]
          %v1417 = vld [vmem:[#allocation2 + $0xf8] sm:$0xff]
          %v1418 = vld [vmem:[#allocation2 + $0x100] sm:$0xff]
          %v1419 = vld [vmem:[#allocation2 + $0x108] sm:$0xff]
          %v1420 = vld [vmem:[#allocation2 + $0x110] sm:$0xff]
          %v1421 = vld [vmem:[#allocation2 + $0x118] sm:$0xff]
          %v1422 = vld [vmem:[#allocation2 + $0x120] sm:$0xff]
          %v1423 = vld [vmem:[#allocation2 + $0x128] sm:$0xff]
          %v1424 = vld [vmem:[#allocation2 + $0x130] sm:$0xff]
          %v1425 = vld [vmem:[#allocation2 + $0x138] sm:$0xff]
          %v1426 = vld [vmem:[#allocation2 + $0x140] sm:$0xff]
          %v1427 = vld [vmem:[#allocation2 + $0x148] sm:$0xff]
          %v1428 = vld [vmem:[#allocation2 + $0x150] sm:$0xff]
          %v1429 = vld [vmem:[#allocation2 + $0x158] sm:$0xff]
          %v1430 = vld [vmem:[#allocation2 + $0x160] sm:$0xff]
          %v1431 = vld [vmem:[#allocation2 + $0x168] sm:$0xff]
          %v1432 = vld [vmem:[#allocation2 + $0x170] sm:$0xff]
          %v1433 = vld [vmem:[#allocation2 + $0x178] sm:$0xff]
          %v1434 = vld [vmem:[#allocation2 + $0x180] sm:$0xff]
          %v1435 = vld [vmem:[#allocation2 + $0x188] sm:$0xff]
          %v1436 = vld [vmem:[#allocation2 + $0x190] sm:$0xff]
          %v1437 = vld [vmem:[#allocation2 + $0x198] sm:$0xff]
          %v1438 = vld [vmem:[#allocation2 + $0x1a0] sm:$0xff]
          %v1439 = vld [vmem:[#allocation2 + $0x1a8] sm:$0xff]
          %v1440 = vld [vmem:[#allocation2 + $0x1b0] sm:$0xff]
          %v1441 = vld [vmem:[#allocation2 + $0x1b8] sm:$0xff]
          %v1442 = vld [vmem:[#allocation2 + $0x1c0] sm:$0xff]
          %v1443 = vld [vmem:[#allocation2 + $0x1c8] sm:$0xff]
          %v1444 = vld [vmem:[#allocation2 + $0x1d0] sm:$0xff]
          %v1445 = vld [vmem:[#allocation2 + $0x1d8] sm:$0xff]
          %v1446 = vld [vmem:[#allocation2 + $0x1e0] sm:$0xff]
          %v1447 = vld [vmem:[#allocation2 + $0x1e8] sm:$0xff]
          %v1448 = vld [vmem:[#allocation2 + $0x1f0] sm:$0xff]
          %v1449 = vld [vmem:[#allocation2 + $0x1f8] sm:$0xff]
          %1450 = vst [vmem:[%s246] sm:$0xff] %v1386
          %1451 = vst [vmem:[%s246 + $0x8] sm:$0xff] %v1387
          %1452 = vst [vmem:[%s246 + $0x10] sm:$0xff] %v1388
          %1453 = vst [vmem:[%s246 + $0x18] sm:$0xff] %v1389
          %1454 = vst [vmem:[%s246 + $0x20] sm:$0xff] %v1390
          %1455 = vst [vmem:[%s246 + $0x28] sm:$0xff] %v1391
          %1456 = vst [vmem:[%s246 + $0x30] sm:$0xff] %v1392
          %1457 = vst [vmem:[%s246 + $0x38] sm:$0xff] %v1393
          %1458 = vst [vmem:[%s246 + $0x40] sm:$0xff] %v1394
          %1459 = vst [vmem:[%s246 + $0x48] sm:$0xff] %v1395
          %1460 = vst [vmem:[%s246 + $0x50] sm:$0xff] %v1396
          %1461 = vst [vmem:[%s246 + $0x58] sm:$0xff] %v1397
          %1462 = vst [vmem:[%s246 + $0x60] sm:$0xff] %v1398
          %1463 = vst [vmem:[%s246 + $0x68] sm:$0xff] %v1399
          %1464 = vst [vmem:[%s246 + $0x70] sm:$0xff] %v1400
          %1465 = vst [vmem:[%s246 + $0x78] sm:$0xff] %v1401
          %1466 = vst [vmem:[%s246 + $0x80] sm:$0xff] %v1402
          %1467 = vst [vmem:[%s246 + $0x88] sm:$0xff] %v1403
          %1468 = vst [vmem:[%s246 + $0x90] sm:$0xff] %v1404
          %1469 = vst [vmem:[%s246 + $0x98] sm:$0xff] %v1405
          %1470 = vst [vmem:[%s246 + $0xa0] sm:$0xff] %v1406
          %1471 = vst [vmem:[%s246 + $0xa8] sm:$0xff] %v1407
          %1472 = vst [vmem:[%s246 + $0xb0] sm:$0xff] %v1408
          %1473 = vst [vmem:[%s246 + $0xb8] sm:$0xff] %v1409
          %1474 = vst [vmem:[%s246 + $0xc0] sm:$0xff] %v1410
          %1475 = vst [vmem:[%s246 + $0xc8] sm:$0xff] %v1411
          %1476 = vst [vmem:[%s246 + $0xd0] sm:$0xff] %v1412
          %1477 = vst [vmem:[%s246 + $0xd8] sm:$0xff] %v1413
          %1478 = vst [vmem:[%s246 + $0xe0] sm:$0xff] %v1414
          %1479 = vst [vmem:[%s246 + $0xe8] sm:$0xff] %v1415
          %1480 = vst [vmem:[%s246 + $0xf0] sm:$0xff] %v1416
          %1481 = vst [vmem:[%s246 + $0xf8] sm:$0xff] %v1417
          %1482 = vst [vmem:[%s246 + $0x100] sm:$0xff] %v1418
          %1483 = vst [vmem:[%s246 + $0x108] sm:$0xff] %v1419
          %1484 = vst [vmem:[%s246 + $0x110] sm:$0xff] %v1420
          %1485 = vst [vmem:[%s246 + $0x118] sm:$0xff] %v1421
          %1486 = vst [vmem:[%s246 + $0x120] sm:$0xff] %v1422
          %1487 = vst [vmem:[%s246 + $0x128] sm:$0xff] %v1423
          %1488 = vst [vmem:[%s246 + $0x130] sm:$0xff] %v1424
          %1489 = vst [vmem:[%s246 + $0x138] sm:$0xff] %v1425
          %1490 = vst [vmem:[%s246 + $0x140] sm:$0xff] %v1426
          %1491 = vst [vmem:[%s246 + $0x148] sm:$0xff] %v1427
          %1492 = vst [vmem:[%s246 + $0x150] sm:$0xff] %v1428
          %1493 = vst [vmem:[%s246 + $0x158] sm:$0xff] %v1429
          %1494 = vst [vmem:[%s246 + $0x160] sm:$0xff] %v1430
          %1495 = vst [vmem:[%s246 + $0x168] sm:$0xff] %v1431
          %1496 = vst [vmem:[%s246 + $0x170] sm:$0xff] %v1432
          %1497 = vst [vmem:[%s246 + $0x178] sm:$0xff] %v1433
          %1498 = vst [vmem:[%s246 + $0x180] sm:$0xff] %v1434
          %1499 = vst [vmem:[%s246 + $0x188] sm:$0xff] %v1435
          %1500 = vst [vmem:[%s246 + $0x190] sm:$0xff] %v1436
          %1501 = vst [vmem:[%s246 + $0x198] sm:$0xff] %v1437
          %1502 = vst [vmem:[%s246 + $0x1a0] sm:$0xff] %v1438
          %1503 = vst [vmem:[%s246 + $0x1a8] sm:$0xff] %v1439
          %1504 = vst [vmem:[%s246 + $0x1b0] sm:$0xff] %v1440
          %1505 = vst [vmem:[%s246 + $0x1b8] sm:$0xff] %v1441
          %1506 = vst [vmem:[%s246 + $0x1c0] sm:$0xff] %v1442
          %1507 = vst [vmem:[%s246 + $0x1c8] sm:$0xff] %v1443
          %1508 = vst [vmem:[%s246 + $0x1d0] sm:$0xff] %v1444
          %1509 = vst [vmem:[%s246 + $0x1d8] sm:$0xff] %v1445
          %1510 = vst [vmem:[%s246 + $0x1e0] sm:$0xff] %v1446
          %1511 = vst [vmem:[%s246 + $0x1e8] sm:$0xff] %v1447
          %1512 = vst [vmem:[%s246 + $0x1f0] sm:$0xff] %v1448
          %1513 = vst [vmem:[%s246 + $0x1f8] sm:$0xff] %v1449
        $region52: #{tpu_custom_call.1} parent=31 // pred_fallthru
          _
        %s1514 = sand.u32 %s116, 1
        %s1515 = scalar_lea.sflag [#allocation5], %s1514
        %s1516 = sand.u32 %s116, 1
        %s1517 = smul.addr %s1516, 512
        %s1518 = scalar_lea.vmem [#allocation9], %s1517
        // Predicated region
        $region53: #{tpu_custom_call.1} parent=31 // pred_check
          %p1519 = pneg %p126
        $region54: #{tpu_custom_call.1} parent=31 // pred_check_branch
          %1521 = sbr.rel (%p1519) target = $region56
        $region55: #{tpu_custom_call.1} parent=31 // pred_region
          %s1522 = smul.u32 64, %s25
          %1524 = vsyncadd %s1515, 0
          %s1525 = smul.addr %s1522, 8
          %s1526 = scalar_lea.hbm %s3, %s1525
          %s1527 = sshll.u32 %s1518, 4
          %s1528 = int_to_ptr.vmem [resolvable:$true] %s1527
          %s1529 = sshll.u32 %s1526, 4
          %s1530 = int_to_ptr.hbm [resolvable:$true] %s1529
          %1535 = dma.vmem_to_hbm [thread:$0]  %s1528, 8192, %s1530, %s1515, 128, 128, 8
        $region56: #{tpu_custom_call.1} parent=31 // pred_fallthru
          _
      $region32: #{tpu_custom_call.1} parent=5 // pred_fallthru
        _
      %p1536 = scmp.le.s32.totalorder 2, %s16
      // Predicated region
      $region57: #{tpu_custom_call.1} parent=5 // pred_check
        %p1537 = pneg %p1536
      $region58: #{tpu_custom_call.1} parent=5 // pred_check_branch
        %1539 = sbr.rel (%p1537) target = $region60
      $region59: #{tpu_custom_call.1} parent=5 // pred_region
        %s1540 = ssub.s32 %s16, 2
        // Predicated region
        $region61: #{tpu_custom_call.1} parent=59 // pred_check
          %p1541 = pneg %p132
        $region62: #{tpu_custom_call.1} parent=59 // pred_check_branch
          %1543 = sbr.rel (%p1541) target = $region64
        $region63: #{tpu_custom_call.1} parent=59 // pred_region
          %s1544 = sand.u32 %s117, 1
          %s1545 = scalar_lea.sflag [#allocation5], %s1544
          %s1546 = sand.u32 %s117, 1
          %s1547 = smul.addr %s1546, 512
          %s1548 = scalar_lea.vmem [#allocation9], %s1547
          %1550 = dma.done %s1545, 8192
        $region64: #{tpu_custom_call.1} parent=59 // pred_fallthru
          _
      $region60: #{tpu_custom_call.1} parent=5 // pred_fallthru
        _
    $region6: #{tpu_custom_call.1} parent=1 // loop_footer
      %s20 = sadd.s32 1, %s16
    $region7: #{tpu_custom_call.1} parent=1 // loop_footer_branch
      %15 = sbr.rel target = $region3
    $region8: #{tpu_custom_call.1} parent=1 // loop_exit
      _
    %1551 = vsyncpa [#allocation4], 1
    %s1552 = scalar_lea.sflag [#allocation4], 1
    %1553 = vsyncpa %s1552, 1
    %1554 = vsyncpa [#allocation7], 1
    %1555 = vsyncpa [#allocation5], 1
    %s1556 = scalar_lea.sflag [#allocation5], 1
    %1557 = vsyncpa %s1556, 1

</llo_original>
